<compile_context>
chip_gen: v5e
topology: v5e:2x2
jax: 0.10.0
libtpu: 0.0.40
codegen_flags: <defaults>
</compile_context>

<pallas_src>
import jax
import jax.numpy as jnp
from jax import lax
from jax.experimental import pallas as pl
from jax.experimental.pallas import tpu as pltpu


def _round_up(x, m):
    return ((x + m - 1) // m) * m


def lstm_last_kernel(x_ref, wih_ref, whh_ref, b_ref, out_ref, gx_ref):
    # x_ref:   (T, TB, D)    bf16 time-major input tile for this batch tile
    # wih_ref: (D, 4Hp)      bf16 input->gates weight (transposed, gate blocks lane-padded)
    # whh_ref: (Hp, 4Hp)     bf16 hidden->gates weight (transposed, lane-padded)
    # b_ref:   (1, 4Hp)      f32 combined bias (b_ih + b_hh), lane-padded
    # out_ref: (TB, Hp)      f32 h_T (last-timestep hidden state) for this batch tile
    # gx_ref:  (T, TB, 4Hp)  f32 scratch: precomputed input-gate projections
    T, TB, D = x_ref.shape
    Hp = out_ref.shape[-1]

    # ---- hoisted input projection: all T timesteps in one big MXU matmul ----
    x_all = x_ref[...].reshape(T * TB, D)
    gx = jnp.dot(x_all, wih_ref[...], preferred_element_type=jnp.float32)
    gx_ref[...] = (gx + b_ref[...]).reshape(T, TB, 4 * Hp)

    whh = whh_ref[...]

    def sigmoid(z):
        # one EUP tanh + VPU fma, instead of exp + reciprocal (2 EUP ops)
        return 0.5 * jnp.tanh(0.5 * z) + 0.5

    def step(t, carry):
        h, c = carry
        # Only the small recurrent matmul sits on the serial critical path.
        gates = gx_ref[t] + jnp.dot(
            h.astype(whh.dtype), whh, preferred_element_type=jnp.float32)
        i_g = sigmoid(gates[:, 0 * Hp:1 * Hp])   # gate order: i, f, g, o (PyTorch)
        f_g = sigmoid(gates[:, 1 * Hp:2 * Hp])
        g_g = jnp.tanh(gates[:, 2 * Hp:3 * Hp])
        o_g = sigmoid(gates[:, 3 * Hp:4 * Hp])
        c_new = f_g * c + i_g * g_g
        h_new = o_g * jnp.tanh(c_new)
        return (h_new, c_new)

    h0 = jnp.zeros((TB, Hp), jnp.float32)
    c0 = jnp.zeros((TB, Hp), jnp.float32)
    # TODO(synk): second-pass opt — keep W_hh resident on the MXU across the recurrence
    # via pltpu.matmul_push_rhs / matmul_acc_lhs / matmul_pop.
    h_T, _ = lax.fori_loop(0, T, step, (h0, c0), unroll=True)
    out_ref[...] = h_T.astype(out_ref.dtype)


def _pad_gate_rows(w, H, Hp):
    # w: (4H, K) -> (4Hp, K); each of the 4 PyTorch gate blocks [i,f,g,o] padded to Hp rows.
    K = w.shape[-1]
    return jnp.pad(w.reshape(4, H, K), ((0, 0), (0, Hp - H), (0, 0))).reshape(4 * Hp, K)


def lstm_aggregate(neighbours, w_ih, w_hh, b_ih, b_hh, perm_key):
    """Pallas implementation of LSTMAggregator.aggre.

    neighbours: (B, N, in_feats) float32
    w_ih: (4H, in_feats), w_hh: (4H, H), b_ih/b_hh: (4H,)  -- PyTorch LSTM param layout.
    Returns (B, H) = lstm_out[:, -1, :].
    """
    B, N, D = neighbours.shape
    H = w_hh.shape[1]
    T = N

    # torch.randperm on the neighbor axis (same permutation for every batch element).
    # Gather directly into time-major (T, B, D) order: a single gather, with the
    # transpose fused into it (avoids materializing permuted AND transposed copies).
    # TODO(synk): second-pass opt — move the permutation into the kernel input pipeline
    # via PrefetchScalarGridSpec(num_scalar_prefetch=1) with a perm-driven index_map.
    perm = jax.random.permutation(perm_key, N)
    x_tm = jnp.swapaxes(neighbours, 0, 1)[perm]            # (T, B, D)

    # ---- lane / sublane padding & tile sizing ----
    Hp = _round_up(H, 128)                                  # lane-align each gate block
    # Batch tile: multiple of 16 sublanes (bf16 packing), capped at 128; shrink if the
    # per-tile VMEM footprint (double-buffered x tile + f32 gate scratch + out) would not
    # leave headroom on v7x's 64 MiB VMEM.
    TB = min(128, _round_up(B, 16))
    budget_bytes = 24 << 20
    while TB > 16 and (2 * T * TB * D * 2            # double-buffered bf16 x tile
                       + T * TB * 4 * Hp * 4         # f32 gate scratch
                       + 2 * TB * Hp * 4) > budget_bytes:
        TB //= 2
    B_pad = _round_up(B, TB)

    x_tm = jnp.pad(x_tm, ((0, 0), (0, B_pad - B), (0, 0))).astype(jnp.bfloat16)

    # Weights/bias to kernel layout: transposed, gate blocks padded to Hp lanes.
    wih_t = jnp.transpose(_pad_gate_rows(w_ih, H, Hp)).astype(jnp.bfloat16)     # (D, 4Hp)
    whh_t = jnp.transpose(_pad_gate_rows(w_hh, H, Hp))                          # (H, 4Hp)
    whh_t = jnp.pad(whh_t, ((0, Hp - H), (0, 0))).astype(jnp.bfloat16)          # (Hp, 4Hp)
    b = jnp.pad((b_ih + b_hh).reshape(4, H), ((0, 0), (0, Hp - H)))
    b = b.reshape(1, 4 * Hp).astype(jnp.float32)

    grid = (B_pad // TB,)
    out = pl.pallas_call(
        lstm_last_kernel,
        out_shape=jax.ShapeDtypeStruct((B_pad, Hp), jnp.float32),
        grid_spec=pltpu.PrefetchScalarGridSpec(
            num_scalar_prefetch=0,
            grid=grid,
            in_specs=[
                pl.BlockSpec((T, TB, D), lambda i: (0, i, 0)),     # x tile (time-major)
                pl.BlockSpec((D, 4 * Hp), lambda i: (0, 0)),       # W_ih^T (resident)
                pl.BlockSpec((Hp, 4 * Hp), lambda i: (0, 0)),      # W_hh^T (resident)
                pl.BlockSpec((1, 4 * Hp), lambda i: (0, 0)),       # bias   (resident)
            ],
            out_specs=pl.BlockSpec((TB, Hp), lambda i: (i, 0)),
            scratch_shapes=[pltpu.VMEM((T, TB, 4 * Hp), jnp.float32)],
        ),
        compiler_params=pltpu.CompilerParams(
            dimension_semantics=("parallel",),   # batch tiles shard across TCs on v7x
            vmem_limit_bytes=48 << 20,           # headroom under v7x's 64 MiB VMEM
        ),
    )(x_tm, wih_t, whh_t, b)

    return out[:B, :H]


if __name__ == "__main__":
    # Small shapes implied by the module: B nodes, N neighbors (sequence), in_feats, hidden.
    B, N, in_feats, hidden = 2, 8, 16, 32

    key = jax.random.PRNGKey(0)
    k_x, k_wih, k_whh, k_bih, k_bhh, k_perm = jax.random.split(key, 6)

    neighbours = jax.random.normal(k_x, (B, N, in_feats), dtype=jnp.float32)

    # Deterministic parameter init (PyTorch default LSTM init is U(-1/sqrt(H), 1/sqrt(H))).
    # TODO(synk): original code calls xavier_uniform_ on `self.lstm.weight`, which is not a
    # real nn.LSTM attribute; we use the standard uniform LSTM init deterministically instead.
    scale = 1.0 / jnp.sqrt(jnp.float32(hidden))
    w_ih = jax.random.uniform(k_wih, (4 * hidden, in_feats), jnp.float32, -scale, scale)
    w_hh = jax.random.uniform(k_whh, (4 * hidden, hidden), jnp.float32, -scale, scale)
    b_ih = jax.random.uniform(k_bih, (4 * hidden,), jnp.float32, -scale, scale)
    b_hh = jax.random.uniform(k_bhh, (4 * hidden,), jnp.float32, -scale, scale)

    c_out = lstm_aggregate(neighbours, w_ih, w_hh, b_ih, b_hh, k_perm)
    c_out = jax.block_until_ready(c_out)
    assert c_out.shape == (B, hidden)
    print("KERNEL_OK")
</pallas_src>

<mosaic_0001>
module attributes {stable_mosaic.version = 11 : i64} {
  func.func @lstm_last_kernel(%arg0: i32, %arg1: memref<8x16x16xbf16, #tpu.memory_space<vmem>>, %arg2: memref<16x512xbf16, #tpu.memory_space<vmem>>, %arg3: memref<128x512xbf16, #tpu.memory_space<vmem>>, %arg4: memref<1x512xf32, #tpu.memory_space<vmem>>, %arg5: memref<16x128xf32, #tpu.memory_space<vmem>>, %arg6: memref<8x16x512xf32, #tpu.memory_space<vmem>>) attributes {dimension_semantics = [#tpu.dimension_semantics<parallel>], iteration_bounds = array<i64: 1>, scalar_prefetch = 0 : i64, scratch_operands = 1 : i64, tpu.core_type = #tpu.core_type<tc>, window_params = [{transform_indices = @transform_0, window_bounds = array<i64: 8, 16, 16>}, {pipeline_mode = #tpu.pipeline_mode<synchronous>, transform_indices = @transform_1, window_bounds = array<i64: 16, 512>}, {pipeline_mode = #tpu.pipeline_mode<synchronous>, transform_indices = @transform_2, window_bounds = array<i64: 128, 512>}, {pipeline_mode = #tpu.pipeline_mode<synchronous>, transform_indices = @transform_3, window_bounds = array<i64: 1, 512>}, {transform_indices = @transform_4, window_bounds = array<i64: 16, 128>}]} {
    %c0 = arith.constant 0 : index
    %c0_0 = arith.constant 0 : index
    %c0_1 = arith.constant 0 : index
    %0 = vector.load %arg1[%c0, %c0_0, %c0_1] : memref<8x16x16xbf16, #tpu.memory_space<vmem>>, vector<8x16x16xbf16>
    %1 = vector.shape_cast %0 : vector<8x16x16xbf16> to vector<128x16xbf16>
    %c0_2 = arith.constant 0 : index
    %c0_3 = arith.constant 0 : index
    %2 = vector.load %arg2[%c0_2, %c0_3] : memref<16x512xbf16, #tpu.memory_space<vmem>>, vector<16x512xbf16>
    %cst = arith.constant dense<0.000000e+00> : vector<128x512xf32>
    %3 = tpu.matmul %1, %2, %cst {dimension_numbers = #tpu.dot_dimension_numbers<[1], [0], [0], [1], [0, 0, 1, 1], [], []>} : vector<128x16xbf16>, vector<16x512xbf16>, vector<128x512xf32> -> vector<128x512xf32>
    %c0_4 = arith.constant 0 : index
    %c0_5 = arith.constant 0 : index
    %4 = vector.load %arg4[%c0_4, %c0_5] : memref<1x512xf32, #tpu.memory_space<vmem>>, vector<1x512xf32>
    %5 = vector.broadcast %4 : vector<1x512xf32> to vector<128x512xf32>
    %6 = arith.addf %3, %5 : vector<128x512xf32>
    %7 = vector.shape_cast %6 : vector<128x512xf32> to vector<8x16x512xf32>
    %c0_6 = arith.constant 0 : index
    %c0_7 = arith.constant 0 : index
    %c0_8 = arith.constant 0 : index
    %8 = vector.load %arg6[%c0_6, %c0_7, %c0_8] : memref<8x16x512xf32, #tpu.memory_space<vmem>>, vector<8x16x512xf32>
    tpu.vector_store %arg6[%c0_6, %c0_7, %c0_8], %7 {strides = array<i32>} : memref<8x16x512xf32, #tpu.memory_space<vmem>>, vector<8x16x512xf32>,
    %c0_9 = arith.constant 0 : index
    %c0_10 = arith.constant 0 : index
    %9 = vector.load %arg3[%c0_9, %c0_10] : memref<128x512xbf16, #tpu.memory_space<vmem>>, vector<128x512xbf16>
    %cst_11 = arith.constant 0.000000e+00 : f32
    %10 = vector.broadcast %cst_11 : f32 to vector<16x128xf32>
    %cst_12 = arith.constant 0.000000e+00 : f32
    %11 = vector.broadcast %cst_12 : f32 to vector<16x128xf32>
    %c0_i32 = arith.constant 0 : i32
    %12 = arith.index_cast %c0_i32 : i32 to index
    %c0_13 = arith.constant 0 : index
    %c0_14 = arith.constant 0 : index
    %13 = vector.load %arg6[%12, %c0_13, %c0_14] : memref<8x16x512xf32, #tpu.memory_space<vmem>>, vector<1x16x512xf32>
    %14 = vector.shape_cast %13 : vector<1x16x512xf32> to vector<16x512xf32>
    %15 = arith.truncf %10 : vector<16x128xf32> to vector<16x128xbf16>
    %cst_15 = arith.constant dense<0.000000e+00> : vector<16x512xf32>
    %16 = tpu.matmul %15, %9, %cst_15 {dimension_numbers = #tpu.dot_dimension_numbers<[1], [0], [0], [1], [0, 0, 1, 1], [], []>} : vector<16x128xbf16>, vector<128x512xbf16>, vector<16x512xf32> -> vector<16x512xf32>
    %17 = arith.addf %14, %16 : vector<16x512xf32>
    %18 = vector.extract_strided_slice %17 {offsets = [0, 0], sizes = [16, 128], strides = [1, 1]} : vector<16x512xf32> to vector<16x128xf32>
    %cst_16 = arith.constant 5.000000e-01 : f32
    %19 = vector.broadcast %cst_16 : f32 to vector<16x128xf32>
    %20 = arith.mulf %19, %18 : vector<16x128xf32>
    %21 = math.tanh %20 : vector<16x128xf32>
    %cst_17 = arith.constant 5.000000e-01 : f32
    %22 = vector.broadcast %cst_17 : f32 to vector<16x128xf32>
    %23 = arith.mulf %22, %21 : vector<16x128xf32>
    %cst_18 = arith.constant 5.000000e-01 : f32
    %24 = vector.broadcast %cst_18 : f32 to vector<16x128xf32>
    %25 = arith.addf %23, %24 : vector<16x128xf32>
    %26 = vector.extract_strided_slice %17 {offsets = [0, 128], sizes = [16, 128], strides = [1, 1]} : vector<16x512xf32> to vector<16x128xf32>
    %cst_19 = arith.constant 5.000000e-01 : f32
    %27 = vector.broadcast %cst_19 : f32 to vector<16x128xf32>
    %28 = arith.mulf %27, %26 : vector<16x128xf32>
    %29 = math.tanh %28 : vector<16x128xf32>
    %cst_20 = arith.constant 5.000000e-01 : f32
    %30 = vector.broadcast %cst_20 : f32 to vector<16x128xf32>
    %31 = arith.mulf %30, %29 : vector<16x128xf32>
    %cst_21 = arith.constant 5.000000e-01 : f32
    %32 = vector.broadcast %cst_21 : f32 to vector<16x128xf32>
    %33 = arith.addf %31, %32 : vector<16x128xf32>
    %34 = vector.extract_strided_slice %17 {offsets = [0, 256], sizes = [16, 128], strides = [1, 1]} : vector<16x512xf32> to vector<16x128xf32>
    %35 = math.tanh %34 : vector<16x128xf32>
    %36 = vector.extract_strided_slice %17 {offsets = [0, 384], sizes = [16, 128], strides = [1, 1]} : vector<16x512xf32> to vector<16x128xf32>
    %cst_22 = arith.constant 5.000000e-01 : f32
    %37 = vector.broadcast %cst_22 : f32 to vector<16x128xf32>
    %38 = arith.mulf %37, %36 : vector<16x128xf32>
    %39 = math.tanh %38 : vector<16x128xf32>
    %cst_23 = arith.constant 5.000000e-01 : f32
    %40 = vector.broadcast %cst_23 : f32 to vector<16x128xf32>
    %41 = arith.mulf %40, %39 : vector<16x128xf32>
    %cst_24 = arith.constant 5.000000e-01 : f32
    %42 = vector.broadcast %cst_24 : f32 to vector<16x128xf32>
    %43 = arith.addf %41, %42 : vector<16x128xf32>
    %44 = arith.mulf %33, %11 : vector<16x128xf32>
    %45 = arith.mulf %25, %35 : vector<16x128xf32>
    %46 = arith.addf %44, %45 : vector<16x128xf32>
    %47 = math.tanh %46 : vector<16x128xf32>
    %48 = arith.mulf %43, %47 : vector<16x128xf32>
    %c1_i32 = arith.constant 1 : i32
    %49 = arith.index_cast %c1_i32 : i32 to index
    %c0_25 = arith.constant 0 : index
    %c0_26 = arith.constant 0 : index
    %50 = vector.load %arg6[%49, %c0_25, %c0_26] : memref<8x16x512xf32, #tpu.memory_space<vmem>>, vector<1x16x512xf32>
    %51 = vector.shape_cast %50 : vector<1x16x512xf32> to vector<16x512xf32>
    %52 = arith.truncf %48 : vector<16x128xf32> to vector<16x128xbf16>
    %cst_27 = arith.constant dense<0.000000e+00> : vector<16x512xf32>
    %53 = tpu.matmul %52, %9, %cst_27 {dimension_numbers = #tpu.dot_dimension_numbers<[1], [0], [0], [1], [0, 0, 1, 1], [], []>} : vector<16x128xbf16>, vector<128x512xbf16>, vector<16x512xf32> -> vector<16x512xf32>
    %54 = arith.addf %51, %53 : vector<16x512xf32>
    %55 = vector.extract_strided_slice %54 {offsets = [0, 0], sizes = [16, 128], strides = [1, 1]} : vector<16x512xf32> to vector<16x128xf32>
    %cst_28 = arith.constant 5.000000e-01 : f32
    %56 = vector.broadcast %cst_28 : f32 to vector<16x128xf32>
    %57 = arith.mulf %56, %55 : vector<16x128xf32>
    %58 = math.tanh %57 : vector<16x128xf32>
    %cst_29 = arith.constant 5.000000e-01 : f32
    %59 = vector.broadcast %cst_29 : f32 to vector<16x128xf32>
    %60 = arith.mulf %59, %58 : vector<16x128xf32>
    %cst_30 = arith.constant 5.000000e-01 : f32
    %61 = vector.broadcast %cst_30 : f32 to vector<16x128xf32>
    %62 = arith.addf %60, %61 : vector<16x128xf32>
    %63 = vector.extract_strided_slice %54 {offsets = [0, 128], sizes = [16, 128], strides = [1, 1]} : vector<16x512xf32> to vector<16x128xf32>
    %cst_31 = arith.constant 5.000000e-01 : f32
    %64 = vector.broadcast %cst_31 : f32 to vector<16x128xf32>
    %65 = arith.mulf %64, %63 : vector<16x128xf32>
    %66 = math.tanh %65 : vector<16x128xf32>
    %cst_32 = arith.constant 5.000000e-01 : f32
    %67 = vector.broadcast %cst_32 : f32 to vector<16x128xf32>
    %68 = arith.mulf %67, %66 : vector<16x128xf32>
    %cst_33 = arith.constant 5.000000e-01 : f32
    %69 = vector.broadcast %cst_33 : f32 to vector<16x128xf32>
    %70 = arith.addf %68, %69 : vector<16x128xf32>
    %71 = vector.extract_strided_slice %54 {offsets = [0, 256], sizes = [16, 128], strides = [1, 1]} : vector<16x512xf32> to vector<16x128xf32>
    %72 = math.tanh %71 : vector<16x128xf32>
    %73 = vector.extract_strided_slice %54 {offsets = [0, 384], sizes = [16, 128], strides = [1, 1]} : vector<16x512xf32> to vector<16x128xf32>
    %cst_34 = arith.constant 5.000000e-01 : f32
    %74 = vector.broadcast %cst_34 : f32 to vector<16x128xf32>
    %75 = arith.mulf %74, %73 : vector<16x128xf32>
    %76 = math.tanh %75 : vector<16x128xf32>
    %cst_35 = arith.constant 5.000000e-01 : f32
    %77 = vector.broadcast %cst_35 : f32 to vector<16x128xf32>
    %78 = arith.mulf %77, %76 : vector<16x128xf32>
    %cst_36 = arith.constant 5.000000e-01 : f32
    %79 = vector.broadcast %cst_36 : f32 to vector<16x128xf32>
    %80 = arith.addf %78, %79 : vector<16x128xf32>
    %81 = arith.mulf %70, %46 : vector<16x128xf32>
    %82 = arith.mulf %62, %72 : vector<16x128xf32>
    %83 = arith.addf %81, %82 : vector<16x128xf32>
    %84 = math.tanh %83 : vector<16x128xf32>
    %85 = arith.mulf %80, %84 : vector<16x128xf32>
    %c2_i32 = arith.constant 2 : i32
    %86 = arith.index_cast %c2_i32 : i32 to index
    %c0_37 = arith.constant 0 : index
    %c0_38 = arith.constant 0 : index
    %87 = vector.load %arg6[%86, %c0_37, %c0_38] : memref<8x16x512xf32, #tpu.memory_space<vmem>>, vector<1x16x512xf32>
    %88 = vector.shape_cast %87 : vector<1x16x512xf32> to vector<16x512xf32>
    %89 = arith.truncf %85 : vector<16x128xf32> to vector<16x128xbf16>
    %cst_39 = arith.constant dense<0.000000e+00> : vector<16x512xf32>
    %90 = tpu.matmul %89, %9, %cst_39 {dimension_numbers = #tpu.dot_dimension_numbers<[1], [0], [0], [1], [0, 0, 1, 1], [], []>} : vector<16x128xbf16>, vector<128x512xbf16>, vector<16x512xf32> -> vector<16x512xf32>
    %91 = arith.addf %88, %90 : vector<16x512xf32>
    %92 = vector.extract_strided_slice %91 {offsets = [0, 0], sizes = [16, 128], strides = [1, 1]} : vector<16x512xf32> to vector<16x128xf32>
    %cst_40 = arith.constant 5.000000e-01 : f32
    %93 = vector.broadcast %cst_40 : f32 to vector<16x128xf32>
    %94 = arith.mulf %93, %92 : vector<16x128xf32>
    %95 = math.tanh %94 : vector<16x128xf32>
    %cst_41 = arith.constant 5.000000e-01 : f32
    %96 = vector.broadcast %cst_41 : f32 to vector<16x128xf32>
    %97 = arith.mulf %96, %95 : vector<16x128xf32>
    %cst_42 = arith.constant 5.000000e-01 : f32
    %98 = vector.broadcast %cst_42 : f32 to vector<16x128xf32>
    %99 = arith.addf %97, %98 : vector<16x128xf32>
    %100 = vector.extract_strided_slice %91 {offsets = [0, 128], sizes = [16, 128], strides = [1, 1]} : vector<16x512xf32> to vector<16x128xf32>
    %cst_43 = arith.constant 5.000000e-01 : f32
    %101 = vector.broadcast %cst_43 : f32 to vector<16x128xf32>
    %102 = arith.mulf %101, %100 : vector<16x128xf32>
    %103 = math.tanh %102 : vector<16x128xf32>
    %cst_44 = arith.constant 5.000000e-01 : f32
    %104 = vector.broadcast %cst_44 : f32 to vector<16x128xf32>
    %105 = arith.mulf %104, %103 : vector<16x128xf32>
    %cst_45 = arith.constant 5.000000e-01 : f32
    %106 = vector.broadcast %cst_45 : f32 to vector<16x128xf32>
    %107 = arith.addf %105, %106 : vector<16x128xf32>
    %108 = vector.extract_strided_slice %91 {offsets = [0, 256], sizes = [16, 128], strides = [1, 1]} : vector<16x512xf32> to vector<16x128xf32>
    %109 = math.tanh %108 : vector<16x128xf32>
    %110 = vector.extract_strided_slice %91 {offsets = [0, 384], sizes = [16, 128], strides = [1, 1]} : vector<16x512xf32> to vector<16x128xf32>
    %cst_46 = arith.constant 5.000000e-01 : f32
    %111 = vector.broadcast %cst_46 : f32 to vector<16x128xf32>
    %112 = arith.mulf %111, %110 : vector<16x128xf32>
    %113 = math.tanh %112 : vector<16x128xf32>
    %cst_47 = arith.constant 5.000000e-01 : f32
    %114 = vector.broadcast %cst_47 : f32 to vector<16x128xf32>
    %115 = arith.mulf %114, %113 : vector<16x128xf32>
    %cst_48 = arith.constant 5.000000e-01 : f32
    %116 = vector.broadcast %cst_48 : f32 to vector<16x128xf32>
    %117 = arith.addf %115, %116 : vector<16x128xf32>
    %118 = arith.mulf %107, %83 : vector<16x128xf32>
    %119 = arith.mulf %99, %109 : vector<16x128xf32>
    %120 = arith.addf %118, %119 : vector<16x128xf32>
    %121 = math.tanh %120 : vector<16x128xf32>
    %122 = arith.mulf %117, %121 : vector<16x128xf32>
    %c3_i32 = arith.constant 3 : i32
    %123 = arith.index_cast %c3_i32 : i32 to index
    %c0_49 = arith.constant 0 : index
    %c0_50 = arith.constant 0 : index
    %124 = vector.load %arg6[%123, %c0_49, %c0_50] : memref<8x16x512xf32, #tpu.memory_space<vmem>>, vector<1x16x512xf32>
    %125 = vector.shape_cast %124 : vector<1x16x512xf32> to vector<16x512xf32>
    %126 = arith.truncf %122 : vector<16x128xf32> to vector<16x128xbf16>
    %cst_51 = arith.constant dense<0.000000e+00> : vector<16x512xf32>
    %127 = tpu.matmul %126, %9, %cst_51 {dimension_numbers = #tpu.dot_dimension_numbers<[1], [0], [0], [1], [0, 0, 1, 1], [], []>} : vector<16x128xbf16>, vector<128x512xbf16>, vector<16x512xf32> -> vector<16x512xf32>
    %128 = arith.addf %125, %127 : vector<16x512xf32>
    %129 = vector.extract_strided_slice %128 {offsets = [0, 0], sizes = [16, 128], strides = [1, 1]} : vector<16x512xf32> to vector<16x128xf32>
    %cst_52 = arith.constant 5.000000e-01 : f32
    %130 = vector.broadcast %cst_52 : f32 to vector<16x128xf32>
    %131 = arith.mulf %130, %129 : vector<16x128xf32>
    %132 = math.tanh %131 : vector<16x128xf32>
    %cst_53 = arith.constant 5.000000e-01 : f32
    %133 = vector.broadcast %cst_53 : f32 to vector<16x128xf32>
    %134 = arith.mulf %133, %132 : vector<16x128xf32>
    %cst_54 = arith.constant 5.000000e-01 : f32
    %135 = vector.broadcast %cst_54 : f32 to vector<16x128xf32>
    %136 = arith.addf %134, %135 : vector<16x128xf32>
    %137 = vector.extract_strided_slice %128 {offsets = [0, 128], sizes = [16, 128], strides = [1, 1]} : vector<16x512xf32> to vector<16x128xf32>
    %cst_55 = arith.constant 5.000000e-01 : f32
    %138 = vector.broadcast %cst_55 : f32 to vector<16x128xf32>
    %139 = arith.mulf %138, %137 : vector<16x128xf32>
    %140 = math.tanh %139 : vector<16x128xf32>
    %cst_56 = arith.constant 5.000000e-01 : f32
    %141 = vector.broadcast %cst_56 : f32 to vector<16x128xf32>
    %142 = arith.mulf %141, %140 : vector<16x128xf32>
    %cst_57 = arith.constant 5.000000e-01 : f32
    %143 = vector.broadcast %cst_57 : f32 to vector<16x128xf32>
    %144 = arith.addf %142, %143 : vector<16x128xf32>
    %145 = vector.extract_strided_slice %128 {offsets = [0, 256], sizes = [16, 128], strides = [1, 1]} : vector<16x512xf32> to vector<16x128xf32>
    %146 = math.tanh %145 : vector<16x128xf32>
    %147 = vector.extract_strided_slice %128 {offsets = [0, 384], sizes = [16, 128], strides = [1, 1]} : vector<16x512xf32> to vector<16x128xf32>
    %cst_58 = arith.constant 5.000000e-01 : f32
    %148 = vector.broadcast %cst_58 : f32 to vector<16x128xf32>
    %149 = arith.mulf %148, %147 : vector<16x128xf32>
    %150 = math.tanh %149 : vector<16x128xf32>
    %cst_59 = arith.constant 5.000000e-01 : f32
    %151 = vector.broadcast %cst_59 : f32 to vector<16x128xf32>
    %152 = arith.mulf %151, %150 : vector<16x128xf32>
    %cst_60 = arith.constant 5.000000e-01 : f32
    %153 = vector.broadcast %cst_60 : f32 to vector<16x128xf32>
    %154 = arith.addf %152, %153 : vector<16x128xf32>
    %155 = arith.mulf %144, %120 : vector<16x128xf32>
    %156 = arith.mulf %136, %146 : vector<16x128xf32>
    %157 = arith.addf %155, %156 : vector<16x128xf32>
    %158 = math.tanh %157 : vector<16x128xf32>
    %159 = arith.mulf %154, %158 : vector<16x128xf32>
    %c4_i32 = arith.constant 4 : i32
    %160 = arith.index_cast %c4_i32 : i32 to index
    %c0_61 = arith.constant 0 : index
    %c0_62 = arith.constant 0 : index
    %161 = vector.load %arg6[%160, %c0_61, %c0_62] : memref<8x16x512xf32, #tpu.memory_space<vmem>>, vector<1x16x512xf32>
    %162 = vector.shape_cast %161 : vector<1x16x512xf32> to vector<16x512xf32>
    %163 = arith.truncf %159 : vector<16x128xf32> to vector<16x128xbf16>
    %cst_63 = arith.constant dense<0.000000e+00> : vector<16x512xf32>
    %164 = tpu.matmul %163, %9, %cst_63 {dimension_numbers = #tpu.dot_dimension_numbers<[1], [0], [0], [1], [0, 0, 1, 1], [], []>} : vector<16x128xbf16>, vector<128x512xbf16>, vector<16x512xf32> -> vector<16x512xf32>
    %165 = arith.addf %162, %164 : vector<16x512xf32>
    %166 = vector.extract_strided_slice %165 {offsets = [0, 0], sizes = [16, 128], strides = [1, 1]} : vector<16x512xf32> to vector<16x128xf32>
    %cst_64 = arith.constant 5.000000e-01 : f32
    %167 = vector.broadcast %cst_64 : f32 to vector<16x128xf32>
    %168 = arith.mulf %167, %166 : vector<16x128xf32>
    %169 = math.tanh %168 : vector<16x128xf32>
    %cst_65 = arith.constant 5.000000e-01 : f32
    %170 = vector.broadcast %cst_65 : f32 to vector<16x128xf32>
    %171 = arith.mulf %170, %169 : vector<16x128xf32>
    %cst_66 = arith.constant 5.000000e-01 : f32
    %172 = vector.broadcast %cst_66 : f32 to vector<16x128xf32>
    %173 = arith.addf %171, %172 : vector<16x128xf32>
    %174 = vector.extract_strided_slice %165 {offsets = [0, 128], sizes = [16, 128], strides = [1, 1]} : vector<16x512xf32> to vector<16x128xf32>
    %cst_67 = arith.constant 5.000000e-01 : f32
    %175 = vector.broadcast %cst_67 : f32 to vector<16x128xf32>
    %176 = arith.mulf %175, %174 : vector<16x128xf32>
    %177 = math.tanh %176 : vector<16x128xf32>
    %cst_68 = arith.constant 5.000000e-01 : f32
    %178 = vector.broadcast %cst_68 : f32 to vector<16x128xf32>
    %179 = arith.mulf %178, %177 : vector<16x128xf32>
    %cst_69 = arith.constant 5.000000e-01 : f32
    %180 = vector.broadcast %cst_69 : f32 to vector<16x128xf32>
    %181 = arith.addf %179, %180 : vector<16x128xf32>
    %182 = vector.extract_strided_slice %165 {offsets = [0, 256], sizes = [16, 128], strides = [1, 1]} : vector<16x512xf32> to vector<16x128xf32>
    %183 = math.tanh %182 : vector<16x128xf32>
    %184 = vector.extract_strided_slice %165 {offsets = [0, 384], sizes = [16, 128], strides = [1, 1]} : vector<16x512xf32> to vector<16x128xf32>
    %cst_70 = arith.constant 5.000000e-01 : f32
    %185 = vector.broadcast %cst_70 : f32 to vector<16x128xf32>
    %186 = arith.mulf %185, %184 : vector<16x128xf32>
    %187 = math.tanh %186 : vector<16x128xf32>
    %cst_71 = arith.constant 5.000000e-01 : f32
    %188 = vector.broadcast %cst_71 : f32 to vector<16x128xf32>
    %189 = arith.mulf %188, %187 : vector<16x128xf32>
    %cst_72 = arith.constant 5.000000e-01 : f32
    %190 = vector.broadcast %cst_72 : f32 to vector<16x128xf32>
    %191 = arith.addf %189, %190 : vector<16x128xf32>
    %192 = arith.mulf %181, %157 : vector<16x128xf32>
    %193 = arith.mulf %173, %183 : vector<16x128xf32>
    %194 = arith.addf %192, %193 : vector<16x128xf32>
    %195 = math.tanh %194 : vector<16x128xf32>
    %196 = arith.mulf %191, %195 : vector<16x128xf32>
    %c5_i32 = arith.constant 5 : i32
    %197 = arith.index_cast %c5_i32 : i32 to index
    %c0_73 = arith.constant 0 : index
    %c0_74 = arith.constant 0 : index
    %198 = vector.load %arg6[%197, %c0_73, %c0_74] : memref<8x16x512xf32, #tpu.memory_space<vmem>>, vector<1x16x512xf32>
    %199 = vector.shape_cast %198 : vector<1x16x512xf32> to vector<16x512xf32>
    %200 = arith.truncf %196 : vector<16x128xf32> to vector<16x128xbf16>
    %cst_75 = arith.constant dense<0.000000e+00> : vector<16x512xf32>
    %201 = tpu.matmul %200, %9, %cst_75 {dimension_numbers = #tpu.dot_dimension_numbers<[1], [0], [0], [1], [0, 0, 1, 1], [], []>} : vector<16x128xbf16>, vector<128x512xbf16>, vector<16x512xf32> -> vector<16x512xf32>
    %202 = arith.addf %199, %201 : vector<16x512xf32>
    %203 = vector.extract_strided_slice %202 {offsets = [0, 0], sizes = [16, 128], strides = [1, 1]} : vector<16x512xf32> to vector<16x128xf32>
    %cst_76 = arith.constant 5.000000e-01 : f32
    %204 = vector.broadcast %cst_76 : f32 to vector<16x128xf32>
    %205 = arith.mulf %204, %203 : vector<16x128xf32>
    %206 = math.tanh %205 : vector<16x128xf32>
    %cst_77 = arith.constant 5.000000e-01 : f32
    %207 = vector.broadcast %cst_77 : f32 to vector<16x128xf32>
    %208 = arith.mulf %207, %206 : vector<16x128xf32>
    %cst_78 = arith.constant 5.000000e-01 : f32
    %209 = vector.broadcast %cst_78 : f32 to vector<16x128xf32>
    %210 = arith.addf %208, %209 : vector<16x128xf32>
    %211 = vector.extract_strided_slice %202 {offsets = [0, 128], sizes = [16, 128], strides = [1, 1]} : vector<16x512xf32> to vector<16x128xf32>
    %cst_79 = arith.constant 5.000000e-01 : f32
    %212 = vector.broadcast %cst_79 : f32 to vector<16x128xf32>
    %213 = arith.mulf %212, %211 : vector<16x128xf32>
    %214 = math.tanh %213 : vector<16x128xf32>
    %cst_80 = arith.constant 5.000000e-01 : f32
    %215 = vector.broadcast %cst_80 : f32 to vector<16x128xf32>
    %216 = arith.mulf %215, %214 : vector<16x128xf32>
    %cst_81 = arith.constant 5.000000e-01 : f32
    %217 = vector.broadcast %cst_81 : f32 to vector<16x128xf32>
    %218 = arith.addf %216, %217 : vector<16x128xf32>
    %219 = vector.extract_strided_slice %202 {offsets = [0, 256], sizes = [16, 128], strides = [1, 1]} : vector<16x512xf32> to vector<16x128xf32>
    %220 = math.tanh %219 : vector<16x128xf32>
    %221 = vector.extract_strided_slice %202 {offsets = [0, 384], sizes = [16, 128], strides = [1, 1]} : vector<16x512xf32> to vector<16x128xf32>
    %cst_82 = arith.constant 5.000000e-01 : f32
    %222 = vector.broadcast %cst_82 : f32 to vector<16x128xf32>
    %223 = arith.mulf %222, %221 : vector<16x128xf32>
    %224 = math.tanh %223 : vector<16x128xf32>
    %cst_83 = arith.constant 5.000000e-01 : f32
    %225 = vector.broadcast %cst_83 : f32 to vector<16x128xf32>
    %226 = arith.mulf %225, %224 : vector<16x128xf32>
    %cst_84 = arith.constant 5.000000e-01 : f32
    %227 = vector.broadcast %cst_84 : f32 to vector<16x128xf32>
    %228 = arith.addf %226, %227 : vector<16x128xf32>
    %229 = arith.mulf %218, %194 : vector<16x128xf32>
    %230 = arith.mulf %210, %220 : vector<16x128xf32>
    %231 = arith.addf %229, %230 : vector<16x128xf32>
    %232 = math.tanh %231 : vector<16x128xf32>
    %233 = arith.mulf %228, %232 : vector<16x128xf32>
    %c6_i32 = arith.constant 6 : i32
    %234 = arith.index_cast %c6_i32 : i32 to index
    %c0_85 = arith.constant 0 : index
    %c0_86 = arith.constant 0 : index
    %235 = vector.load %arg6[%234, %c0_85, %c0_86] : memref<8x16x512xf32, #tpu.memory_space<vmem>>, vector<1x16x512xf32>
    %236 = vector.shape_cast %235 : vector<1x16x512xf32> to vector<16x512xf32>
    %237 = arith.truncf %233 : vector<16x128xf32> to vector<16x128xbf16>
    %cst_87 = arith.constant dense<0.000000e+00> : vector<16x512xf32>
    %238 = tpu.matmul %237, %9, %cst_87 {dimension_numbers = #tpu.dot_dimension_numbers<[1], [0], [0], [1], [0, 0, 1, 1], [], []>} : vector<16x128xbf16>, vector<128x512xbf16>, vector<16x512xf32> -> vector<16x512xf32>
    %239 = arith.addf %236, %238 : vector<16x512xf32>
    %240 = vector.extract_strided_slice %239 {offsets = [0, 0], sizes = [16, 128], strides = [1, 1]} : vector<16x512xf32> to vector<16x128xf32>
    %cst_88 = arith.constant 5.000000e-01 : f32
    %241 = vector.broadcast %cst_88 : f32 to vector<16x128xf32>
    %242 = arith.mulf %241, %240 : vector<16x128xf32>
    %243 = math.tanh %242 : vector<16x128xf32>
    %cst_89 = arith.constant 5.000000e-01 : f32
    %244 = vector.broadcast %cst_89 : f32 to vector<16x128xf32>
    %245 = arith.mulf %244, %243 : vector<16x128xf32>
    %cst_90 = arith.constant 5.000000e-01 : f32
    %246 = vector.broadcast %cst_90 : f32 to vector<16x128xf32>
    %247 = arith.addf %245, %246 : vector<16x128xf32>
    %248 = vector.extract_strided_slice %239 {offsets = [0, 128], sizes = [16, 128], strides = [1, 1]} : vector<16x512xf32> to vector<16x128xf32>
    %cst_91 = arith.constant 5.000000e-01 : f32
    %249 = vector.broadcast %cst_91 : f32 to vector<16x128xf32>
    %250 = arith.mulf %249, %248 : vector<16x128xf32>
    %251 = math.tanh %250 : vector<16x128xf32>
    %cst_92 = arith.constant 5.000000e-01 : f32
    %252 = vector.broadcast %cst_92 : f32 to vector<16x128xf32>
    %253 = arith.mulf %252, %251 : vector<16x128xf32>
    %cst_93 = arith.constant 5.000000e-01 : f32
    %254 = vector.broadcast %cst_93 : f32 to vector<16x128xf32>
    %255 = arith.addf %253, %254 : vector<16x128xf32>
    %256 = vector.extract_strided_slice %239 {offsets = [0, 256], sizes = [16, 128], strides = [1, 1]} : vector<16x512xf32> to vector<16x128xf32>
    %257 = math.tanh %256 : vector<16x128xf32>
    %258 = vector.extract_strided_slice %239 {offsets = [0, 384], sizes = [16, 128], strides = [1, 1]} : vector<16x512xf32> to vector<16x128xf32>
    %cst_94 = arith.constant 5.000000e-01 : f32
    %259 = vector.broadcast %cst_94 : f32 to vector<16x128xf32>
    %260 = arith.mulf %259, %258 : vector<16x128xf32>
    %261 = math.tanh %260 : vector<16x128xf32>
    %cst_95 = arith.constant 5.000000e-01 : f32
    %262 = vector.broadcast %cst_95 : f32 to vector<16x128xf32>
    %263 = arith.mulf %262, %261 : vector<16x128xf32>
    %cst_96 = arith.constant 5.000000e-01 : f32
    %264 = vector.broadcast %cst_96 : f32 to vector<16x128xf32>
    %265 = arith.addf %263, %264 : vector<16x128xf32>
    %266 = arith.mulf %255, %231 : vector<16x128xf32>
    %267 = arith.mulf %247, %257 : vector<16x128xf32>
    %268 = arith.addf %266, %267 : vector<16x128xf32>
    %269 = math.tanh %268 : vector<16x128xf32>
    %270 = arith.mulf %265, %269 : vector<16x128xf32>
    %c7_i32 = arith.constant 7 : i32
    %271 = arith.index_cast %c7_i32 : i32 to index
    %c0_97 = arith.constant 0 : index
    %c0_98 = arith.constant 0 : index
    %272 = vector.load %arg6[%271, %c0_97, %c0_98] : memref<8x16x512xf32, #tpu.memory_space<vmem>>, vector<1x16x512xf32>
    %273 = vector.shape_cast %272 : vector<1x16x512xf32> to vector<16x512xf32>
    %274 = arith.truncf %270 : vector<16x128xf32> to vector<16x128xbf16>
    %cst_99 = arith.constant dense<0.000000e+00> : vector<16x512xf32>
    %275 = tpu.matmul %274, %9, %cst_99 {dimension_numbers = #tpu.dot_dimension_numbers<[1], [0], [0], [1], [0, 0, 1, 1], [], []>} : vector<16x128xbf16>, vector<128x512xbf16>, vector<16x512xf32> -> vector<16x512xf32>
    %276 = arith.addf %273, %275 : vector<16x512xf32>
    %277 = vector.extract_strided_slice %276 {offsets = [0, 0], sizes = [16, 128], strides = [1, 1]} : vector<16x512xf32> to vector<16x128xf32>
    %cst_100 = arith.constant 5.000000e-01 : f32
    %278 = vector.broadcast %cst_100 : f32 to vector<16x128xf32>
    %279 = arith.mulf %278, %277 : vector<16x128xf32>
    %280 = math.tanh %279 : vector<16x128xf32>
    %cst_101 = arith.constant 5.000000e-01 : f32
    %281 = vector.broadcast %cst_101 : f32 to vector<16x128xf32>
    %282 = arith.mulf %281, %280 : vector<16x128xf32>
    %cst_102 = arith.constant 5.000000e-01 : f32
    %283 = vector.broadcast %cst_102 : f32 to vector<16x128xf32>
    %284 = arith.addf %282, %283 : vector<16x128xf32>
    %285 = vector.extract_strided_slice %276 {offsets = [0, 128], sizes = [16, 128], strides = [1, 1]} : vector<16x512xf32> to vector<16x128xf32>
    %cst_103 = arith.constant 5.000000e-01 : f32
    %286 = vector.broadcast %cst_103 : f32 to vector<16x128xf32>
    %287 = arith.mulf %286, %285 : vector<16x128xf32>
    %288 = math.tanh %287 : vector<16x128xf32>
    %cst_104 = arith.constant 5.000000e-01 : f32
    %289 = vector.broadcast %cst_104 : f32 to vector<16x128xf32>
    %290 = arith.mulf %289, %288 : vector<16x128xf32>
    %cst_105 = arith.constant 5.000000e-01 : f32
    %291 = vector.broadcast %cst_105 : f32 to vector<16x128xf32>
    %292 = arith.addf %290, %291 : vector<16x128xf32>
    %293 = vector.extract_strided_slice %276 {offsets = [0, 256], sizes = [16, 128], strides = [1, 1]} : vector<16x512xf32> to vector<16x128xf32>
    %294 = math.tanh %293 : vector<16x128xf32>
    %295 = vector.extract_strided_slice %276 {offsets = [0, 384], sizes = [16, 128], strides = [1, 1]} : vector<16x512xf32> to vector<16x128xf32>
    %cst_106 = arith.constant 5.000000e-01 : f32
    %296 = vector.broadcast %cst_106 : f32 to vector<16x128xf32>
    %297 = arith.mulf %296, %295 : vector<16x128xf32>
    %298 = math.tanh %297 : vector<16x128xf32>
    %cst_107 = arith.constant 5.000000e-01 : f32
    %299 = vector.broadcast %cst_107 : f32 to vector<16x128xf32>
    %300 = arith.mulf %299, %298 : vector<16x128xf32>
    %cst_108 = arith.constant 5.000000e-01 : f32
    %301 = vector.broadcast %cst_108 : f32 to vector<16x128xf32>
    %302 = arith.addf %300, %301 : vector<16x128xf32>
    %303 = arith.mulf %292, %268 : vector<16x128xf32>
    %304 = arith.mulf %284, %294 : vector<16x128xf32>
    %305 = arith.addf %303, %304 : vector<16x128xf32>
    %306 = math.tanh %305 : vector<16x128xf32>
    %307 = arith.mulf %302, %306 : vector<16x128xf32>
    %c8_i32 = arith.constant 8 : i32
    %c0_109 = arith.constant 0 : index
    %c0_110 = arith.constant 0 : index
    %308 = vector.load %arg5[%c0_109, %c0_110] : memref<16x128xf32, #tpu.memory_space<vmem>>, vector<16x128xf32>
    tpu.vector_store %arg5[%c0_109, %c0_110], %307 {strides = array<i32>} : memref<16x128xf32, #tpu.memory_space<vmem>>, vector<16x128xf32>,
    return
  }
  func.func @transform_0(%arg0: i32) -> (i32, i32, i32) {
    %c0_i32 = arith.constant 0 : i32
    %c0_i32_0 = arith.constant 0 : i32
    %c0_i32_1 = arith.constant 0 : i32
    return %c0_i32, %arg0, %c0_i32_0 : i32, i32, i32
  }
  func.func @transform_1(%arg0: i32) -> (i32, i32) {
    %c0_i32 = arith.constant 0 : i32
    %c0_i32_0 = arith.constant 0 : i32
    %c0_i32_1 = arith.constant 0 : i32
    return %c0_i32, %c0_i32_0 : i32, i32
  }
  func.func @transform_2(%arg0: i32) -> (i32, i32) {
    %c0_i32 = arith.constant 0 : i32
    %c0_i32_0 = arith.constant 0 : i32
    %c0_i32_1 = arith.constant 0 : i32
    return %c0_i32, %c0_i32_0 : i32, i32
  }
  func.func @transform_3(%arg0: i32) -> (i32, i32) {
    %c0_i32 = arith.constant 0 : i32
    %c0_i32_0 = arith.constant 0 : i32
    %c0_i32_1 = arith.constant 0 : i32
    return %c0_i32, %c0_i32_0 : i32, i32
  }
  func.func @transform_4(%arg0: i32) -> (i32, i32) {
    %c0_i32 = arith.constant 0 : i32
    %c0_i32_0 = arith.constant 0 : i32
    return %arg0, %c0_i32 : i32, i32
  }
}

</mosaic_0001>

<llo_original>
// kernel: tpu_custom_call.1
$region0: #{tpu_custom_call.1}
  #allocation0 [shape = 'u32[]', space=smem, size = 0x4, offset = 0x4, fixed_abs, tag = 'smem constant byte address 0x4 - core index']
  #allocation1 [shape = 'u32[72,128]{1,0:T(1,128)}', space=vmem, size = 0x9000, scoped, tag = 'internal scratch']
  #allocation2 [shape = 'f32[8,16,512]{2,1,0:T(8,128)}', space=vmem, size = 0x40000, scoped, tag = 'scratch operand']
  %s0 = inlined_call_operand.hbm [shape: bf16[8,16,16], index: 0, kind: input, shape index: {}]
  %s1 = inlined_call_operand.hbm [shape: bf16[16,512], index: 1, kind: input, shape index: {}]
  %s2 = inlined_call_operand.hbm [shape: bf16[128,512], index: 2, kind: input, shape index: {}]
  %s3 = inlined_call_operand.hbm [shape: f32[1,512], index: 3, kind: input, shape index: {}]
  %s4 = inlined_call_operand.hbm [shape: f32[16,128], index: 4, kind: output, shape index: {}]
  %s5 = sld [smem:[#allocation0]]
  $region42: #{tpu_custom_call.1} parent=0
    _
  %s7 = ssub.s32 1, %s5
  %s8 = scalar_select 0, %s7, %s5
  $region1: #{tpu_custom_call.1} parent=0
    #allocation3 [shape = 'u8[32768]{0}', space=vmem, size = 0x8000, scoped, tag = 'input window, operand 0, single buffered']
    #allocation4 [shape = 's32[1]{0}', space=sflag, size = 0x4, scoped, tag = 'scoped memory for tpu_custom_call.1']
    #allocation5 [shape = 's32[1]{0}', space=sflag, size = 0x4, scoped, tag = 'scoped memory for tpu_custom_call.1']
    #allocation6 [shape = 'u8[16384]{0}', space=vmem, size = 0x4000, scoped, tag = 'input window, operand 1, single buffered']
    #allocation7 [shape = 's32[1]{0}', space=sflag, size = 0x4, scoped, tag = 'scoped memory for tpu_custom_call.1']
    #allocation8 [shape = 'u8[131072]{0}', space=vmem, size = 0x20000, scoped, tag = 'input window, operand 2, single buffered']
    #allocation9 [shape = 'u8[2048]{0}', space=vmem, size = 0x800, scoped, tag = 'input window, operand 3, single buffered']
    #allocation10 [shape = 's32[1]{0}', space=sflag, size = 0x4, scoped, tag = 'scoped memory for tpu_custom_call.1']
    #allocation11 [shape = 'u8[8192]{0}', space=vmem, size = 0x2000, scoped, tag = 'output window, operand 0, single buffered']
    %9 = vsyncpa [#allocation4], 0
    %10 = vsyncpa [#allocation7], 0
    %11 = vsyncpa [#allocation10], 0
    %12 = vsyncpa [#allocation5], 0
    // Predicated region
    $region2: #{tpu_custom_call.1} parent=1 // pred_check
      _
    $region3: #{tpu_custom_call.1} parent=1 // pred_check_branch
      %14 = sbr.rel (0) target = $region5
    $region4: #{tpu_custom_call.1} parent=1 // pred_region
      %16 = vsyncadd [#allocation4], 0
      %s17 = sshll.u32 %s0, 4
      %s18 = int_to_ptr.hbm [resolvable:$true] %s17
      %s19 = sshll.u32 [#allocation3], 4
      %s20 = int_to_ptr.vmem [resolvable:$true] %s19
      %25 = dma.hbm_to_vmem [thread:$0]  %s18, 1024, %s20, [#allocation4], 64, 64, 4
    $region5: #{tpu_custom_call.1} parent=1 // pred_fallthru
      _
    // Predicated region
    $region6: #{tpu_custom_call.1} parent=1 // pred_check
      _
    $region7: #{tpu_custom_call.1} parent=1 // pred_check_branch
      %27 = sbr.rel (0) target = $region9
    $region8: #{tpu_custom_call.1} parent=1 // pred_region
      %29 = vsyncadd [#allocation7], 0
      %s30 = sshll.u32 %s1, 4
      %s31 = int_to_ptr.hbm [resolvable:$true] %s30
      %s32 = sshll.u32 [#allocation6], 4
      %s33 = int_to_ptr.vmem [resolvable:$true] %s32
      %38 = dma.hbm_to_vmem [thread:$0]  %s31, 512, %s33, [#allocation7], 256, 256, 16
    $region9: #{tpu_custom_call.1} parent=1 // pred_fallthru
      _
    // Predicated region
    $region10: #{tpu_custom_call.1} parent=1 // pred_check
      _
    $region11: #{tpu_custom_call.1} parent=1 // pred_check_branch
      %40 = sbr.rel (0) target = $region13
    $region12: #{tpu_custom_call.1} parent=1 // pred_region
      %42 = vsyncadd [#allocation7], 0
      %s43 = sshll.u32 %s2, 4
      %s44 = int_to_ptr.hbm [resolvable:$true] %s43
      %s45 = sshll.u32 [#allocation8], 4
      %s46 = int_to_ptr.vmem [resolvable:$true] %s45
      %51 = dma.hbm_to_vmem [thread:$0]  %s44, 4096, %s46, [#allocation7], 256, 256, 16
    $region13: #{tpu_custom_call.1} parent=1 // pred_fallthru
      _
    // Predicated region
    $region14: #{tpu_custom_call.1} parent=1 // pred_check
      _
    $region15: #{tpu_custom_call.1} parent=1 // pred_check_branch
      %53 = sbr.rel (0) target = $region17
    $region16: #{tpu_custom_call.1} parent=1 // pred_region
      %55 = vsyncadd [#allocation10], 0
      %s57 = sshll.u32 %s3, 4
      %s58 = int_to_ptr.hbm [resolvable:$true] %s57
      %s59 = sshll.u32 [#allocation9], 4
      %s60 = int_to_ptr.vmem [resolvable:$true] %s59
      %62 = dma.hbm_to_vmem [thread:$0]  %s58, 64, %s60, [#allocation10]
    $region17: #{tpu_custom_call.1} parent=1 // pred_fallthru
      _
    // Predicated region
    $region18: #{tpu_custom_call.1} parent=1 // pred_check
      _
    $region19: #{tpu_custom_call.1} parent=1 // pred_check_branch
      %64 = sbr.rel (0) target = $region21
    $region20: #{tpu_custom_call.1} parent=1 // pred_region
      %66 = dma.done [#allocation4], 1024
    $region21: #{tpu_custom_call.1} parent=1 // pred_fallthru
      _
    // Predicated region
    $region22: #{tpu_custom_call.1} parent=1 // pred_check
      _
    $region23: #{tpu_custom_call.1} parent=1 // pred_check_branch
      %68 = sbr.rel (0) target = $region25
    $region24: #{tpu_custom_call.1} parent=1 // pred_region
      %70 = dma.done [#allocation7], 512
    $region25: #{tpu_custom_call.1} parent=1 // pred_fallthru
      _
    // Predicated region
    $region26: #{tpu_custom_call.1} parent=1 // pred_check
      _
    $region27: #{tpu_custom_call.1} parent=1 // pred_check_branch
      %72 = sbr.rel (0) target = $region29
    $region28: #{tpu_custom_call.1} parent=1 // pred_region
      %74 = dma.done [#allocation7], 4096
    $region29: #{tpu_custom_call.1} parent=1 // pred_fallthru
      _
    // Predicated region
    $region30: #{tpu_custom_call.1} parent=1 // pred_check
      _
    $region31: #{tpu_custom_call.1} parent=1 // pred_check_branch
      %76 = sbr.rel (0) target = $region33
    $region32: #{tpu_custom_call.1} parent=1 // pred_region
      %78 = dma.done [#allocation10], 64
    $region33: #{tpu_custom_call.1} parent=1 // pred_fallthru
      _
    %v80 = vld [vmem:[#allocation3] sm:$0xf]
    %v81 = vld [vmem:[#allocation3 + $0x4] sm:$0xf]
    %v82 = vld [vmem:[#allocation3 + $0x8] sm:$0xf]
    %v83 = vld [vmem:[#allocation3 + $0xc] sm:$0xf]
    %v84 = vld [vmem:[#allocation3 + $0x10] sm:$0xf]
    %v85 = vld [vmem:[#allocation3 + $0x14] sm:$0xf]
    %v86 = vld [vmem:[#allocation3 + $0x18] sm:$0xf]
    %v87 = vld [vmem:[#allocation3 + $0x1c] sm:$0xf]
    %v88 = vld [vmem:[#allocation3 + $0x20] sm:$0xf]
    %v89 = vld [vmem:[#allocation3 + $0x24] sm:$0xf]
    %v90 = vld [vmem:[#allocation3 + $0x28] sm:$0xf]
    %v91 = vld [vmem:[#allocation3 + $0x2c] sm:$0xf]
    %v92 = vld [vmem:[#allocation3 + $0x30] sm:$0xf]
    %v93 = vld [vmem:[#allocation3 + $0x34] sm:$0xf]
    %v94 = vld [vmem:[#allocation3 + $0x38] sm:$0xf]
    %v95 = vld [vmem:[#allocation3 + $0x3c] sm:$0xf]
    %v96 = vld [vmem:[#allocation6] sm:$0xff]
    %v97 = vld [vmem:[#allocation6 + $0x8] sm:$0xff]
    %v98 = vld [vmem:[#allocation6 + $0x10] sm:$0xff]
    %v99 = vld [vmem:[#allocation6 + $0x18] sm:$0xff]
    %v100 = vld [vmem:[#allocation9] sm:$0xf]
    %v102 = vperm.slane %v100, 0
    %v103 = vperm.slane %v100, 1
    %v104 = vperm.slane %v100, 2
    %v105 = vperm.slane %v100, 3
    %v126 = vunpack.c.l.b16 %v80
    %v127 = vunpack.c.l.b16 %v81
    %v128 = vunpack.c.l.b16 %v82
    %v129 = vunpack.c.l.b16 %v83
    %v130 = vunpack.c.l.b16 %v84
    %v131 = vunpack.c.l.b16 %v85
    %v132 = vunpack.c.l.b16 %v86
    %v133 = vunpack.c.l.b16 %v87
    %v134 = vunpack.c.l.b16 %v88
    %v135 = vunpack.c.l.b16 %v89
    %v136 = vunpack.c.l.b16 %v90
    %v137 = vunpack.c.l.b16 %v91
    %v138 = vunpack.c.l.b16 %v92
    %v139 = vunpack.c.l.b16 %v93
    %v140 = vunpack.c.l.b16 %v94
    %v141 = vunpack.c.l.b16 %v95
    %v142 = vpack.c.b16 %v127, %v126
    %v143 = vpack.c.b16 %v129, %v128
    %v144 = vpack.c.b16 %v131, %v130
    %v145 = vpack.c.b16 %v133, %v132
    %v146 = vpack.c.b16 %v135, %v134
    %v147 = vpack.c.b16 %v137, %v136
    %v148 = vpack.c.b16 %v139, %v138
    %v149 = vpack.c.b16 %v141, %v140
    %v154 = vunpack.c.l.b16 %v96
    %v155 = vunpack.c.h.b16 %v96
    %v156 = vunpack.c.l.b16 %v97
    %v157 = vunpack.c.h.b16 %v97
    %v158 = vunpack.c.l.b16 %v98
    %v159 = vunpack.c.h.b16 %v98
    %v160 = vunpack.c.l.b16 %v99
    %v161 = vunpack.c.h.b16 %v99
    %v162 = vpack.c.b16 %v158, %v154
    %v163 = vpack.c.b16 %v159, %v155
    %v164 = vpack.c.b16 %v160, %v156
    %v165 = vpack.c.b16 %v161, %v157
    %vm170 = vcmask 130048
    %v172 = vsel %vm170, %v142, 0
    %v175 = vsel %vm170, %v143, 0
    %v178 = vsel %vm170, %v144, 0
    %v181 = vsel %vm170, %v145, 0
    %v184 = vsel %vm170, %v146, 0
    %v187 = vsel %vm170, %v147, 0
    %v190 = vsel %vm170, %v148, 0
    %v193 = vsel %vm170, %v149, 0
    %195 = vmatpush.bf16.msra.mxu0 0
    %196 = vmatpush.bf16.msra.mxu0 0
    %197 = vmatpush.bf16.msra.mxu0 0
    %198 = vmatpush.bf16.msra.mxu0 0
    %199 = vmatpush.bf16.msra.mxu0 0
    %200 = vmatpush.bf16.msra.mxu0 0
    %201 = vmatpush.bf16.msra.mxu0 0
    %202 = vmatpush.bf16.msra.mxu0 %v162
    %203 = vmatmul.bf16.gmra.mxu0 %v172
    %v204 = vpop.f32.mrf.mxu0
    %v205 = vadd.f32 %v102, %v204
    %v206 = vpop.f32.mrf.mxu0
    %v207 = vadd.f32 %v102, %v206
    %208 = vmatmul.bf16.gmra.mxu0 %v175
    %v209 = vpop.f32.mrf.mxu0
    %v210 = vadd.f32 %v102, %v209
    %v211 = vpop.f32.mrf.mxu0
    %v212 = vadd.f32 %v102, %v211
    %213 = vmatmul.bf16.gmra.mxu0 %v178
    %v214 = vpop.f32.mrf.mxu0
    %v215 = vadd.f32 %v102, %v214
    %v216 = vpop.f32.mrf.mxu0
    %v217 = vadd.f32 %v102, %v216
    %218 = vmatmul.bf16.gmra.mxu0 %v181
    %v219 = vpop.f32.mrf.mxu0
    %v220 = vadd.f32 %v102, %v219
    %v221 = vpop.f32.mrf.mxu0
    %v222 = vadd.f32 %v102, %v221
    %223 = vmatmul.bf16.gmra.mxu0 %v184
    %v224 = vpop.f32.mrf.mxu0
    %v225 = vadd.f32 %v102, %v224
    %v226 = vpop.f32.mrf.mxu0
    %v227 = vadd.f32 %v102, %v226
    %228 = vmatmul.bf16.gmra.mxu0 %v187
    %v229 = vpop.f32.mrf.mxu0
    %v230 = vadd.f32 %v102, %v229
    %v231 = vpop.f32.mrf.mxu0
    %v232 = vadd.f32 %v102, %v231
    %233 = vmatmul.bf16.gmra.mxu0 %v190
    %v234 = vpop.f32.mrf.mxu0
    %v235 = vadd.f32 %v102, %v234
    %v236 = vpop.f32.mrf.mxu0
    %v237 = vadd.f32 %v102, %v236
    %238 = vmatmul.bf16.gmra.mxu0 %v193
    %v239 = vpop.f32.mrf.mxu0
    %v240 = vadd.f32 %v102, %v239
    %v241 = vpop.f32.mrf.mxu0
    %v242 = vadd.f32 %v102, %v241
    %243 = vdwg.mxu0
    %244 = vmatpush.bf16.msra.mxu0 0
    %245 = vmatpush.bf16.msra.mxu0 0
    %246 = vmatpush.bf16.msra.mxu0 0
    %247 = vmatpush.bf16.msra.mxu0 0
    %248 = vmatpush.bf16.msra.mxu0 0
    %249 = vmatpush.bf16.msra.mxu0 0
    %250 = vmatpush.bf16.msra.mxu0 0
    %251 = vmatpush.bf16.msra.mxu0 %v163
    %252 = vmatmul.bf16.gmra.mxu0 %v172
    %v253 = vpop.f32.mrf.mxu0
    %v254 = vadd.f32 %v103, %v253
    %v255 = vpop.f32.mrf.mxu0
    %v256 = vadd.f32 %v103, %v255
    %257 = vmatmul.bf16.gmra.mxu0 %v175
    %v258 = vpop.f32.mrf.mxu0
    %v259 = vadd.f32 %v103, %v258
    %v260 = vpop.f32.mrf.mxu0
    %v261 = vadd.f32 %v103, %v260
    %262 = vmatmul.bf16.gmra.mxu0 %v178
    %v263 = vpop.f32.mrf.mxu0
    %v264 = vadd.f32 %v103, %v263
    %v265 = vpop.f32.mrf.mxu0
    %v266 = vadd.f32 %v103, %v265
    %267 = vmatmul.bf16.gmra.mxu0 %v181
    %v268 = vpop.f32.mrf.mxu0
    %v269 = vadd.f32 %v103, %v268
    %v270 = vpop.f32.mrf.mxu0
    %v271 = vadd.f32 %v103, %v270
    %272 = vmatmul.bf16.gmra.mxu0 %v184
    %v273 = vpop.f32.mrf.mxu0
    %v274 = vadd.f32 %v103, %v273
    %v275 = vpop.f32.mrf.mxu0
    %v276 = vadd.f32 %v103, %v275
    %277 = vmatmul.bf16.gmra.mxu0 %v187
    %v278 = vpop.f32.mrf.mxu0
    %v279 = vadd.f32 %v103, %v278
    %v280 = vpop.f32.mrf.mxu0
    %v281 = vadd.f32 %v103, %v280
    %282 = vmatmul.bf16.gmra.mxu0 %v190
    %v283 = vpop.f32.mrf.mxu0
    %v284 = vadd.f32 %v103, %v283
    %v285 = vpop.f32.mrf.mxu0
    %v286 = vadd.f32 %v103, %v285
    %287 = vmatmul.bf16.gmra.mxu0 %v193
    %v288 = vpop.f32.mrf.mxu0
    %v289 = vadd.f32 %v103, %v288
    %v290 = vpop.f32.mrf.mxu0
    %v291 = vadd.f32 %v103, %v290
    %292 = vdwg.mxu0
    %293 = vmatpush.bf16.msra.mxu0 0
    %294 = vmatpush.bf16.msra.mxu0 0
    %295 = vmatpush.bf16.msra.mxu0 0
    %296 = vmatpush.bf16.msra.mxu0 0
    %297 = vmatpush.bf16.msra.mxu0 0
    %298 = vmatpush.bf16.msra.mxu0 0
    %299 = vmatpush.bf16.msra.mxu0 0
    %300 = vmatpush.bf16.msra.mxu0 %v164
    %301 = vmatmul.bf16.gmra.mxu0 %v172
    %v302 = vpop.f32.mrf.mxu0
    %v303 = vadd.f32 %v104, %v302
    %v304 = vpop.f32.mrf.mxu0
    %v305 = vadd.f32 %v104, %v304
    %306 = vmatmul.bf16.gmra.mxu0 %v175
    %v307 = vpop.f32.mrf.mxu0
    %v308 = vadd.f32 %v104, %v307
    %v309 = vpop.f32.mrf.mxu0
    %v310 = vadd.f32 %v104, %v309
    %311 = vmatmul.bf16.gmra.mxu0 %v178
    %v312 = vpop.f32.mrf.mxu0
    %v313 = vadd.f32 %v104, %v312
    %v314 = vpop.f32.mrf.mxu0
    %v315 = vadd.f32 %v104, %v314
    %316 = vmatmul.bf16.gmra.mxu0 %v181
    %v317 = vpop.f32.mrf.mxu0
    %v318 = vadd.f32 %v104, %v317
    %v319 = vpop.f32.mrf.mxu0
    %v320 = vadd.f32 %v104, %v319
    %321 = vmatmul.bf16.gmra.mxu0 %v184
    %v322 = vpop.f32.mrf.mxu0
    %v323 = vadd.f32 %v104, %v322
    %v324 = vpop.f32.mrf.mxu0
    %v325 = vadd.f32 %v104, %v324
    %326 = vmatmul.bf16.gmra.mxu0 %v187
    %v327 = vpop.f32.mrf.mxu0
    %v328 = vadd.f32 %v104, %v327
    %v329 = vpop.f32.mrf.mxu0
    %v330 = vadd.f32 %v104, %v329
    %331 = vmatmul.bf16.gmra.mxu0 %v190
    %v332 = vpop.f32.mrf.mxu0
    %v333 = vadd.f32 %v104, %v332
    %v334 = vpop.f32.mrf.mxu0
    %v335 = vadd.f32 %v104, %v334
    %336 = vmatmul.bf16.gmra.mxu0 %v193
    %v337 = vpop.f32.mrf.mxu0
    %v338 = vadd.f32 %v104, %v337
    %v339 = vpop.f32.mrf.mxu0
    %v340 = vadd.f32 %v104, %v339
    %341 = vdwg.mxu0
    %342 = vmatpush.bf16.msra.mxu0 0
    %343 = vmatpush.bf16.msra.mxu0 0
    %344 = vmatpush.bf16.msra.mxu0 0
    %345 = vmatpush.bf16.msra.mxu0 0
    %346 = vmatpush.bf16.msra.mxu0 0
    %347 = vmatpush.bf16.msra.mxu0 0
    %348 = vmatpush.bf16.msra.mxu0 0
    %349 = vmatpush.bf16.msra.mxu0 %v165
    %350 = vmatmul.bf16.gmra.mxu0 %v172
    %v351 = vpop.f32.mrf.mxu0
    %v352 = vadd.f32 %v105, %v351
    %v353 = vpop.f32.mrf.mxu0
    %v354 = vadd.f32 %v105, %v353
    %355 = vmatmul.bf16.gmra.mxu0 %v175
    %v356 = vpop.f32.mrf.mxu0
    %v357 = vadd.f32 %v105, %v356
    %v358 = vpop.f32.mrf.mxu0
    %v359 = vadd.f32 %v105, %v358
    %360 = vmatmul.bf16.gmra.mxu0 %v178
    %v361 = vpop.f32.mrf.mxu0
    %v362 = vadd.f32 %v105, %v361
    %v363 = vpop.f32.mrf.mxu0
    %v364 = vadd.f32 %v105, %v363
    %365 = vmatmul.bf16.gmra.mxu0 %v181
    %v366 = vpop.f32.mrf.mxu0
    %v367 = vadd.f32 %v105, %v366
    %v368 = vpop.f32.mrf.mxu0
    %v369 = vadd.f32 %v105, %v368
    %370 = vmatmul.bf16.gmra.mxu0 %v184
    %v371 = vpop.f32.mrf.mxu0
    %v372 = vadd.f32 %v105, %v371
    %v373 = vpop.f32.mrf.mxu0
    %v374 = vadd.f32 %v105, %v373
    %375 = vmatmul.bf16.gmra.mxu0 %v187
    %v376 = vpop.f32.mrf.mxu0
    %v377 = vadd.f32 %v105, %v376
    %v378 = vpop.f32.mrf.mxu0
    %v379 = vadd.f32 %v105, %v378
    %380 = vmatmul.bf16.gmra.mxu0 %v190
    %v381 = vpop.f32.mrf.mxu0
    %v382 = vadd.f32 %v105, %v381
    %v383 = vpop.f32.mrf.mxu0
    %v384 = vadd.f32 %v105, %v383
    %385 = vmatmul.bf16.gmra.mxu0 %v193
    %v386 = vpop.f32.mrf.mxu0
    %v387 = vadd.f32 %v105, %v386
    %v388 = vpop.f32.mrf.mxu0
    %v389 = vadd.f32 %v105, %v388
    %390 = vdwg.mxu0
    %391 = vst [vmem:[#allocation2] sm:$0xff] %v205
    %392 = vst [vmem:[#allocation2 + $0x8] sm:$0xff] %v254
    %393 = vst [vmem:[#allocation2 + $0x10] sm:$0xff] %v303
    %394 = vst [vmem:[#allocation2 + $0x18] sm:$0xff] %v352
    %395 = vst [vmem:[#allocation2 + $0x20] sm:$0xff] %v207
    %396 = vst [vmem:[#allocation2 + $0x28] sm:$0xff] %v256
    %397 = vst [vmem:[#allocation2 + $0x30] sm:$0xff] %v305
    %398 = vst [vmem:[#allocation2 + $0x38] sm:$0xff] %v354
    %399 = vst [vmem:[#allocation2 + $0x40] sm:$0xff] %v210
    %400 = vst [vmem:[#allocation2 + $0x48] sm:$0xff] %v259
    %401 = vst [vmem:[#allocation2 + $0x50] sm:$0xff] %v308
    %402 = vst [vmem:[#allocation2 + $0x58] sm:$0xff] %v357
    %403 = vst [vmem:[#allocation2 + $0x60] sm:$0xff] %v212
    %404 = vst [vmem:[#allocation2 + $0x68] sm:$0xff] %v261
    %405 = vst [vmem:[#allocation2 + $0x70] sm:$0xff] %v310
    %406 = vst [vmem:[#allocation2 + $0x78] sm:$0xff] %v359
    %407 = vst [vmem:[#allocation2 + $0x80] sm:$0xff] %v215
    %408 = vst [vmem:[#allocation2 + $0x88] sm:$0xff] %v264
    %409 = vst [vmem:[#allocation2 + $0x90] sm:$0xff] %v313
    %410 = vst [vmem:[#allocation2 + $0x98] sm:$0xff] %v362
    %411 = vst [vmem:[#allocation2 + $0xa0] sm:$0xff] %v217
    %412 = vst [vmem:[#allocation2 + $0xa8] sm:$0xff] %v266
    %413 = vst [vmem:[#allocation2 + $0xb0] sm:$0xff] %v315
    %414 = vst [vmem:[#allocation2 + $0xb8] sm:$0xff] %v364
    %415 = vst [vmem:[#allocation2 + $0xc0] sm:$0xff] %v220
    %416 = vst [vmem:[#allocation2 + $0xc8] sm:$0xff] %v269
    %417 = vst [vmem:[#allocation2 + $0xd0] sm:$0xff] %v318
    %418 = vst [vmem:[#allocation2 + $0xd8] sm:$0xff] %v367
    %419 = vst [vmem:[#allocation2 + $0xe0] sm:$0xff] %v222
    %420 = vst [vmem:[#allocation2 + $0xe8] sm:$0xff] %v271
    %421 = vst [vmem:[#allocation2 + $0xf0] sm:$0xff] %v320
    %422 = vst [vmem:[#allocation2 + $0xf8] sm:$0xff] %v369
    %423 = vst [vmem:[#allocation2 + $0x100] sm:$0xff] %v225
    %424 = vst [vmem:[#allocation2 + $0x108] sm:$0xff] %v274
    %425 = vst [vmem:[#allocation2 + $0x110] sm:$0xff] %v323
    %426 = vst [vmem:[#allocation2 + $0x118] sm:$0xff] %v372
    %427 = vst [vmem:[#allocation2 + $0x120] sm:$0xff] %v227
    %428 = vst [vmem:[#allocation2 + $0x128] sm:$0xff] %v276
    %429 = vst [vmem:[#allocation2 + $0x130] sm:$0xff] %v325
    %430 = vst [vmem:[#allocation2 + $0x138] sm:$0xff] %v374
    %431 = vst [vmem:[#allocation2 + $0x140] sm:$0xff] %v230
    %432 = vst [vmem:[#allocation2 + $0x148] sm:$0xff] %v279
    %433 = vst [vmem:[#allocation2 + $0x150] sm:$0xff] %v328
    %434 = vst [vmem:[#allocation2 + $0x158] sm:$0xff] %v377
    %435 = vst [vmem:[#allocation2 + $0x160] sm:$0xff] %v232
    %436 = vst [vmem:[#allocation2 + $0x168] sm:$0xff] %v281
    %437 = vst [vmem:[#allocation2 + $0x170] sm:$0xff] %v330
    %438 = vst [vmem:[#allocation2 + $0x178] sm:$0xff] %v379
    %439 = vst [vmem:[#allocation2 + $0x180] sm:$0xff] %v235
    %440 = vst [vmem:[#allocation2 + $0x188] sm:$0xff] %v284
    %441 = vst [vmem:[#allocation2 + $0x190] sm:$0xff] %v333
    %442 = vst [vmem:[#allocation2 + $0x198] sm:$0xff] %v382
    %443 = vst [vmem:[#allocation2 + $0x1a0] sm:$0xff] %v237
    %444 = vst [vmem:[#allocation2 + $0x1a8] sm:$0xff] %v286
    %445 = vst [vmem:[#allocation2 + $0x1b0] sm:$0xff] %v335
    %446 = vst [vmem:[#allocation2 + $0x1b8] sm:$0xff] %v384
    %447 = vst [vmem:[#allocation2 + $0x1c0] sm:$0xff] %v240
    %448 = vst [vmem:[#allocation2 + $0x1c8] sm:$0xff] %v289
    %449 = vst [vmem:[#allocation2 + $0x1d0] sm:$0xff] %v338
    %450 = vst [vmem:[#allocation2 + $0x1d8] sm:$0xff] %v387
    %451 = vst [vmem:[#allocation2 + $0x1e0] sm:$0xff] %v242
    %452 = vst [vmem:[#allocation2 + $0x1e8] sm:$0xff] %v291
    %453 = vst [vmem:[#allocation2 + $0x1f0] sm:$0xff] %v340
    %454 = vst [vmem:[#allocation2 + $0x1f8] sm:$0xff] %v389
    %v455 = vld [vmem:[#allocation8] sm:$0xff]
    %v456 = vld [vmem:[#allocation8 + $0x8] sm:$0xff]
    %v457 = vld [vmem:[#allocation8 + $0x10] sm:$0xff]
    %v458 = vld [vmem:[#allocation8 + $0x18] sm:$0xff]
    %v459 = vld [vmem:[#allocation8 + $0x20] sm:$0xff]
    %v460 = vld [vmem:[#allocation8 + $0x28] sm:$0xff]
    %v461 = vld [vmem:[#allocation8 + $0x30] sm:$0xff]
    %v462 = vld [vmem:[#allocation8 + $0x38] sm:$0xff]
    %v463 = vld [vmem:[#allocation8 + $0x40] sm:$0xff]
    %v464 = vld [vmem:[#allocation8 + $0x48] sm:$0xff]
    %v465 = vld [vmem:[#allocation8 + $0x50] sm:$0xff]
    %v466 = vld [vmem:[#allocation8 + $0x58] sm:$0xff]
    %v467 = vld [vmem:[#allocation8 + $0x60] sm:$0xff]
    %v468 = vld [vmem:[#allocation8 + $0x68] sm:$0xff]
    %v469 = vld [vmem:[#allocation8 + $0x70] sm:$0xff]
    %v470 = vld [vmem:[#allocation8 + $0x78] sm:$0xff]
    %v471 = vld [vmem:[#allocation8 + $0x80] sm:$0xff]
    %v472 = vld [vmem:[#allocation8 + $0x88] sm:$0xff]
    %v473 = vld [vmem:[#allocation8 + $0x90] sm:$0xff]
    %v474 = vld [vmem:[#allocation8 + $0x98] sm:$0xff]
    %v475 = vld [vmem:[#allocation8 + $0xa0] sm:$0xff]
    %v476 = vld [vmem:[#allocation8 + $0xa8] sm:$0xff]
    %v477 = vld [vmem:[#allocation8 + $0xb0] sm:$0xff]
    %v478 = vld [vmem:[#allocation8 + $0xb8] sm:$0xff]
    %v479 = vld [vmem:[#allocation8 + $0xc0] sm:$0xff]
    %v480 = vld [vmem:[#allocation8 + $0xc8] sm:$0xff]
    %v481 = vld [vmem:[#allocation8 + $0xd0] sm:$0xff]
    %v482 = vld [vmem:[#allocation8 + $0xd8] sm:$0xff]
    %v483 = vld [vmem:[#allocation8 + $0xe0] sm:$0xff]
    %v484 = vld [vmem:[#allocation8 + $0xe8] sm:$0xff]
    %v485 = vld [vmem:[#allocation8 + $0xf0] sm:$0xff]
    %v486 = vld [vmem:[#allocation8 + $0xf8] sm:$0xff]
    %v487 = vld [vmem:[#allocation2] sm:$0xff]
    %v488 = vld [vmem:[#allocation2 + $0x8] sm:$0xff]
    %v489 = vld [vmem:[#allocation2 + $0x10] sm:$0xff]
    %v490 = vld [vmem:[#allocation2 + $0x18] sm:$0xff]
    %v491 = vld [vmem:[#allocation2 + $0x20] sm:$0xff]
    %v492 = vld [vmem:[#allocation2 + $0x28] sm:$0xff]
    %v493 = vld [vmem:[#allocation2 + $0x30] sm:$0xff]
    %v494 = vld [vmem:[#allocation2 + $0x38] sm:$0xff]
    %v527 = vunpack.c.l.b16 %v455
    %v528 = vunpack.c.h.b16 %v455
    %v529 = vunpack.c.l.b16 %v456
    %v530 = vunpack.c.h.b16 %v456
    %v531 = vunpack.c.l.b16 %v457
    %v532 = vunpack.c.h.b16 %v457
    %v533 = vunpack.c.l.b16 %v458
    %v534 = vunpack.c.h.b16 %v458
    %v535 = vunpack.c.l.b16 %v459
    %v536 = vunpack.c.h.b16 %v459
    %v537 = vunpack.c.l.b16 %v460
    %v538 = vunpack.c.h.b16 %v460
    %v539 = vunpack.c.l.b16 %v461
    %v540 = vunpack.c.h.b16 %v461
    %v541 = vunpack.c.l.b16 %v462
    %v542 = vunpack.c.h.b16 %v462
    %v543 = vunpack.c.l.b16 %v463
    %v544 = vunpack.c.h.b16 %v463
    %v545 = vunpack.c.l.b16 %v464
    %v546 = vunpack.c.h.b16 %v464
    %v547 = vunpack.c.l.b16 %v465
    %v548 = vunpack.c.h.b16 %v465
    %v549 = vunpack.c.l.b16 %v466
    %v550 = vunpack.c.h.b16 %v466
    %v551 = vunpack.c.l.b16 %v467
    %v552 = vunpack.c.h.b16 %v467
    %v553 = vunpack.c.l.b16 %v468
    %v554 = vunpack.c.h.b16 %v468
    %v555 = vunpack.c.l.b16 %v469
    %v556 = vunpack.c.h.b16 %v469
    %v557 = vunpack.c.l.b16 %v470
    %v558 = vunpack.c.h.b16 %v470
    %v559 = vunpack.c.l.b16 %v471
    %v560 = vunpack.c.h.b16 %v471
    %v561 = vunpack.c.l.b16 %v472
    %v562 = vunpack.c.h.b16 %v472
    %v563 = vunpack.c.l.b16 %v473
    %v564 = vunpack.c.h.b16 %v473
    %v565 = vunpack.c.l.b16 %v474
    %v566 = vunpack.c.h.b16 %v474
    %v567 = vunpack.c.l.b16 %v475
    %v568 = vunpack.c.h.b16 %v475
    %v569 = vunpack.c.l.b16 %v476
    %v570 = vunpack.c.h.b16 %v476
    %v571 = vunpack.c.l.b16 %v477
    %v572 = vunpack.c.h.b16 %v477
    %v573 = vunpack.c.l.b16 %v478
    %v574 = vunpack.c.h.b16 %v478
    %v575 = vunpack.c.l.b16 %v479
    %v576 = vunpack.c.h.b16 %v479
    %v577 = vunpack.c.l.b16 %v480
    %v578 = vunpack.c.h.b16 %v480
    %v579 = vunpack.c.l.b16 %v481
    %v580 = vunpack.c.h.b16 %v481
    %v581 = vunpack.c.l.b16 %v482
    %v582 = vunpack.c.h.b16 %v482
    %v583 = vunpack.c.l.b16 %v483
    %v584 = vunpack.c.h.b16 %v483
    %v585 = vunpack.c.l.b16 %v484
    %v586 = vunpack.c.h.b16 %v484
    %v587 = vunpack.c.l.b16 %v485
    %v588 = vunpack.c.h.b16 %v485
    %v589 = vunpack.c.l.b16 %v486
    %v590 = vunpack.c.h.b16 %v486
    %v591 = vpack.c.b16 %v531, %v527
    %v592 = vpack.c.b16 %v532, %v528
    %v593 = vpack.c.b16 %v533, %v529
    %v594 = vpack.c.b16 %v534, %v530
    %v595 = vpack.c.b16 %v539, %v535
    %v596 = vpack.c.b16 %v540, %v536
    %v597 = vpack.c.b16 %v541, %v537
    %v598 = vpack.c.b16 %v542, %v538
    %v599 = vpack.c.b16 %v547, %v543
    %v600 = vpack.c.b16 %v548, %v544
    %v601 = vpack.c.b16 %v549, %v545
    %v602 = vpack.c.b16 %v550, %v546
    %v603 = vpack.c.b16 %v555, %v551
    %v604 = vpack.c.b16 %v556, %v552
    %v605 = vpack.c.b16 %v557, %v553
    %v606 = vpack.c.b16 %v558, %v554
    %v607 = vpack.c.b16 %v563, %v559
    %v608 = vpack.c.b16 %v564, %v560
    %v609 = vpack.c.b16 %v565, %v561
    %v610 = vpack.c.b16 %v566, %v562
    %v611 = vpack.c.b16 %v571, %v567
    %v612 = vpack.c.b16 %v572, %v568
    %v613 = vpack.c.b16 %v573, %v569
    %v614 = vpack.c.b16 %v574, %v570
    %v615 = vpack.c.b16 %v579, %v575
    %v616 = vpack.c.b16 %v580, %v576
    %v617 = vpack.c.b16 %v581, %v577
    %v618 = vpack.c.b16 %v582, %v578
    %v619 = vpack.c.b16 %v587, %v583
    %v620 = vpack.c.b16 %v588, %v584
    %v621 = vpack.c.b16 %v589, %v585
    %v622 = vpack.c.b16 %v590, %v586
    %655 = vmatpush.bf16.msra.mxu0 %v619
    %656 = vmatpush.bf16.msra.mxu0 %v615
    %657 = vmatpush.bf16.msra.mxu0 %v611
    %658 = vmatpush.bf16.msra.mxu0 %v607
    %659 = vmatpush.bf16.msra.mxu0 %v603
    %660 = vmatpush.bf16.msra.mxu0 %v599
    %661 = vmatpush.bf16.msra.mxu0 %v595
    %662 = vmatpush.bf16.msra.mxu0 %v591
    %663 = vmatmul.bf16.gmra.mxu0 0
    %v664 = vpop.f32.mrf.mxu0
    %v665 = vadd.f32 0.0, %v664
    %v666 = vpop.f32.mrf.mxu0
    %v667 = vadd.f32 0.0, %v666
    %668 = vdwg.mxu0
    %669 = vmatpush.bf16.msra.mxu0 %v620
    %670 = vmatpush.bf16.msra.mxu0 %v616
    %671 = vmatpush.bf16.msra.mxu0 %v612
    %672 = vmatpush.bf16.msra.mxu0 %v608
    %673 = vmatpush.bf16.msra.mxu0 %v604
    %674 = vmatpush.bf16.msra.mxu0 %v600
    %675 = vmatpush.bf16.msra.mxu0 %v596
    %676 = vmatpush.bf16.msra.mxu0 %v592
    %677 = vmatmul.bf16.gmra.mxu0 0
    %v678 = vpop.f32.mrf.mxu0
    %v679 = vadd.f32 0.0, %v678
    %v680 = vpop.f32.mrf.mxu0
    %v681 = vadd.f32 0.0, %v680
    %682 = vdwg.mxu0
    %683 = vmatpush.bf16.msra.mxu0 %v621
    %684 = vmatpush.bf16.msra.mxu0 %v617
    %685 = vmatpush.bf16.msra.mxu0 %v613
    %686 = vmatpush.bf16.msra.mxu0 %v609
    %687 = vmatpush.bf16.msra.mxu0 %v605
    %688 = vmatpush.bf16.msra.mxu0 %v601
    %689 = vmatpush.bf16.msra.mxu0 %v597
    %690 = vmatpush.bf16.msra.mxu0 %v593
    %691 = vmatmul.bf16.gmra.mxu0 0
    %v692 = vpop.f32.mrf.mxu0
    %v693 = vadd.f32 0.0, %v692
    %v694 = vpop.f32.mrf.mxu0
    %v695 = vadd.f32 0.0, %v694
    %696 = vdwg.mxu0
    %697 = vmatpush.bf16.msra.mxu0 %v622
    %698 = vmatpush.bf16.msra.mxu0 %v618
    %699 = vmatpush.bf16.msra.mxu0 %v614
    %700 = vmatpush.bf16.msra.mxu0 %v610
    %701 = vmatpush.bf16.msra.mxu0 %v606
    %702 = vmatpush.bf16.msra.mxu0 %v602
    %703 = vmatpush.bf16.msra.mxu0 %v598
    %704 = vmatpush.bf16.msra.mxu0 %v594
    %705 = vmatmul.bf16.gmra.mxu0 0
    %v706 = vpop.f32.mrf.mxu0
    %v707 = vadd.f32 0.0, %v706
    %v708 = vpop.f32.mrf.mxu0
    %v709 = vadd.f32 0.0, %v708
    %710 = vdwg.mxu0
    %v711 = vadd.f32 %v487, %v665
    %v712 = vadd.f32 %v488, %v679
    %v713 = vadd.f32 %v489, %v693
    %v714 = vadd.f32 %v490, %v707
    %v715 = vadd.f32 %v491, %v667
    %v716 = vadd.f32 %v492, %v681
    %v717 = vadd.f32 %v493, %v695
    %v718 = vadd.f32 %v494, %v709
    %v719 = vmul.f32 %v711, 0.5
    %v720 = vmul.f32 %v715, 0.5
    %v721 = vtanh.pop %v719
    %v722 = vtanh.pop %v720
    %v723 = vmul.f32 %v721, 0.5
    %v724 = vmul.f32 %v722, 0.5
    %v725 = vadd.f32 %v723, 0.5
    %v726 = vadd.f32 %v724, 0.5
    %v727 = vmul.f32 %v712, 0.5
    %v728 = vmul.f32 %v716, 0.5
    %v729 = vtanh.pop %v727
    %v730 = vtanh.pop %v728
    %v731 = vmul.f32 %v729, 0.5
    %v732 = vmul.f32 %v730, 0.5
    %v733 = vadd.f32 %v731, 0.5
    %v734 = vadd.f32 %v732, 0.5
    %v735 = vtanh.pop %v713
    %v736 = vtanh.pop %v717
    %v737 = vmul.f32 %v714, 0.5
    %v738 = vmul.f32 %v718, 0.5
    %v739 = vtanh.pop %v737
    %v740 = vtanh.pop %v738
    %v741 = vmul.f32 %v739, 0.5
    %v742 = vmul.f32 %v740, 0.5
    %v743 = vadd.f32 %v741, 0.5
    %v744 = vadd.f32 %v742, 0.5
    %v745 = vmul.f32 %v733, 0.0
    %v746 = vmul.f32 %v734, 0.0
    %v747 = vmul.f32 %v725, %v735
    %v748 = vmul.f32 %v726, %v736
    %v749 = vadd.f32 %v745, %v747
    %v750 = vadd.f32 %v746, %v748
    %v751 = vtanh.pop %v749
    %v752 = vtanh.pop %v750
    %v753 = vmul.f32 %v743, %v751
    %v754 = vmul.f32 %v744, %v752
    %s755 = scalar_lea.vmem [#allocation2], 64
    %v756 = vld [vmem:[%s755] sm:$0xff]
    %v757 = vld [vmem:[%s755 + $0x8] sm:$0xff]
    %v758 = vld [vmem:[%s755 + $0x10] sm:$0xff]
    %v759 = vld [vmem:[%s755 + $0x18] sm:$0xff]
    %v760 = vld [vmem:[%s755 + $0x20] sm:$0xff]
    %v761 = vld [vmem:[%s755 + $0x28] sm:$0xff]
    %v762 = vld [vmem:[%s755 + $0x30] sm:$0xff]
    %v763 = vld [vmem:[%s755 + $0x38] sm:$0xff]
    %v764 = vpack.c.bf16 %v754, %v753
    %765 = vmatpush.bf16.msra.mxu0 %v619
    %766 = vmatpush.bf16.msra.mxu0 %v615
    %767 = vmatpush.bf16.msra.mxu0 %v611
    %768 = vmatpush.bf16.msra.mxu0 %v607
    %769 = vmatpush.bf16.msra.mxu0 %v603
    %770 = vmatpush.bf16.msra.mxu0 %v599
    %771 = vmatpush.bf16.msra.mxu0 %v595
    %772 = vmatpush.bf16.msra.mxu0 %v591
    %773 = vmatmul.bf16.gmra.mxu0 %v764
    %v774 = vpop.f32.mrf.mxu0
    %v775 = vadd.f32 0.0, %v774
    %v776 = vpop.f32.mrf.mxu0
    %v777 = vadd.f32 0.0, %v776
    %778 = vdwg.mxu0
    %779 = vmatpush.bf16.msra.mxu0 %v620
    %780 = vmatpush.bf16.msra.mxu0 %v616
    %781 = vmatpush.bf16.msra.mxu0 %v612
    %782 = vmatpush.bf16.msra.mxu0 %v608
    %783 = vmatpush.bf16.msra.mxu0 %v604
    %784 = vmatpush.bf16.msra.mxu0 %v600
    %785 = vmatpush.bf16.msra.mxu0 %v596
    %786 = vmatpush.bf16.msra.mxu0 %v592
    %787 = vmatmul.bf16.gmra.mxu0 %v764
    %v788 = vpop.f32.mrf.mxu0
    %v789 = vadd.f32 0.0, %v788
    %v790 = vpop.f32.mrf.mxu0
    %v791 = vadd.f32 0.0, %v790
    %792 = vdwg.mxu0
    %793 = vmatpush.bf16.msra.mxu0 %v621
    %794 = vmatpush.bf16.msra.mxu0 %v617
    %795 = vmatpush.bf16.msra.mxu0 %v613
    %796 = vmatpush.bf16.msra.mxu0 %v609
    %797 = vmatpush.bf16.msra.mxu0 %v605
    %798 = vmatpush.bf16.msra.mxu0 %v601
    %799 = vmatpush.bf16.msra.mxu0 %v597
    %800 = vmatpush.bf16.msra.mxu0 %v593
    %801 = vmatmul.bf16.gmra.mxu0 %v764
    %v802 = vpop.f32.mrf.mxu0
    %v803 = vadd.f32 0.0, %v802
    %v804 = vpop.f32.mrf.mxu0
    %v805 = vadd.f32 0.0, %v804
    %806 = vdwg.mxu0
    %807 = vmatpush.bf16.msra.mxu0 %v622
    %808 = vmatpush.bf16.msra.mxu0 %v618
    %809 = vmatpush.bf16.msra.mxu0 %v614
    %810 = vmatpush.bf16.msra.mxu0 %v610
    %811 = vmatpush.bf16.msra.mxu0 %v606
    %812 = vmatpush.bf16.msra.mxu0 %v602
    %813 = vmatpush.bf16.msra.mxu0 %v598
    %814 = vmatpush.bf16.msra.mxu0 %v594
    %815 = vmatmul.bf16.gmra.mxu0 %v764
    %v816 = vpop.f32.mrf.mxu0
    %v817 = vadd.f32 0.0, %v816
    %v818 = vpop.f32.mrf.mxu0
    %v819 = vadd.f32 0.0, %v818
    %820 = vdwg.mxu0
    %v821 = vadd.f32 %v756, %v775
    %v822 = vadd.f32 %v757, %v789
    %v823 = vadd.f32 %v758, %v803
    %v824 = vadd.f32 %v759, %v817
    %v825 = vadd.f32 %v760, %v777
    %v826 = vadd.f32 %v761, %v791
    %v827 = vadd.f32 %v762, %v805
    %v828 = vadd.f32 %v763, %v819
    %v829 = vmul.f32 %v821, 0.5
    %v830 = vmul.f32 %v825, 0.5
    %v831 = vtanh.pop %v829
    %v832 = vtanh.pop %v830
    %v833 = vmul.f32 %v831, 0.5
    %v834 = vmul.f32 %v832, 0.5
    %v835 = vadd.f32 %v833, 0.5
    %v836 = vadd.f32 %v834, 0.5
    %v837 = vmul.f32 %v822, 0.5
    %v838 = vmul.f32 %v826, 0.5
    %v839 = vtanh.pop %v837
    %v840 = vtanh.pop %v838
    %v841 = vmul.f32 %v839, 0.5
    %v842 = vmul.f32 %v840, 0.5
    %v843 = vadd.f32 %v841, 0.5
    %v844 = vadd.f32 %v842, 0.5
    %v845 = vtanh.pop %v823
    %v846 = vtanh.pop %v827
    %v847 = vmul.f32 %v824, 0.5
    %v848 = vmul.f32 %v828, 0.5
    %v849 = vtanh.pop %v847
    %v850 = vtanh.pop %v848
    %v851 = vmul.f32 %v849, 0.5
    %v852 = vmul.f32 %v850, 0.5
    %v853 = vadd.f32 %v851, 0.5
    %v854 = vadd.f32 %v852, 0.5
    %v855 = vmul.f32 %v843, %v749
    %v856 = vmul.f32 %v844, %v750
    %v857 = vmul.f32 %v835, %v845
    %v858 = vmul.f32 %v836, %v846
    %v859 = vadd.f32 %v855, %v857
    %v860 = vadd.f32 %v856, %v858
    %v861 = vtanh.pop %v859
    %v862 = vtanh.pop %v860
    %v863 = vmul.f32 %v853, %v861
    %v864 = vmul.f32 %v854, %v862
    %s865 = scalar_lea.vmem [#allocation2], 128
    %v866 = vld [vmem:[%s865] sm:$0xff]
    %v867 = vld [vmem:[%s865 + $0x8] sm:$0xff]
    %v868 = vld [vmem:[%s865 + $0x10] sm:$0xff]
    %v869 = vld [vmem:[%s865 + $0x18] sm:$0xff]
    %v870 = vld [vmem:[%s865 + $0x20] sm:$0xff]
    %v871 = vld [vmem:[%s865 + $0x28] sm:$0xff]
    %v872 = vld [vmem:[%s865 + $0x30] sm:$0xff]
    %v873 = vld [vmem:[%s865 + $0x38] sm:$0xff]
    %v874 = vpack.c.bf16 %v864, %v863
    %875 = vmatpush.bf16.msra.mxu0 %v619
    %876 = vmatpush.bf16.msra.mxu0 %v615
    %877 = vmatpush.bf16.msra.mxu0 %v611
    %878 = vmatpush.bf16.msra.mxu0 %v607
    %879 = vmatpush.bf16.msra.mxu0 %v603
    %880 = vmatpush.bf16.msra.mxu0 %v599
    %881 = vmatpush.bf16.msra.mxu0 %v595
    %882 = vmatpush.bf16.msra.mxu0 %v591
    %883 = vmatmul.bf16.gmra.mxu0 %v874
    %v884 = vpop.f32.mrf.mxu0
    %v885 = vadd.f32 0.0, %v884
    %v886 = vpop.f32.mrf.mxu0
    %v887 = vadd.f32 0.0, %v886
    %888 = vdwg.mxu0
    %889 = vmatpush.bf16.msra.mxu0 %v620
    %890 = vmatpush.bf16.msra.mxu0 %v616
    %891 = vmatpush.bf16.msra.mxu0 %v612
    %892 = vmatpush.bf16.msra.mxu0 %v608
    %893 = vmatpush.bf16.msra.mxu0 %v604
    %894 = vmatpush.bf16.msra.mxu0 %v600
    %895 = vmatpush.bf16.msra.mxu0 %v596
    %896 = vmatpush.bf16.msra.mxu0 %v592
    %897 = vmatmul.bf16.gmra.mxu0 %v874
    %v898 = vpop.f32.mrf.mxu0
    %v899 = vadd.f32 0.0, %v898
    %v900 = vpop.f32.mrf.mxu0
    %v901 = vadd.f32 0.0, %v900
    %902 = vdwg.mxu0
    %903 = vmatpush.bf16.msra.mxu0 %v621
    %904 = vmatpush.bf16.msra.mxu0 %v617
    %905 = vmatpush.bf16.msra.mxu0 %v613
    %906 = vmatpush.bf16.msra.mxu0 %v609
    %907 = vmatpush.bf16.msra.mxu0 %v605
    %908 = vmatpush.bf16.msra.mxu0 %v601
    %909 = vmatpush.bf16.msra.mxu0 %v597
    %910 = vmatpush.bf16.msra.mxu0 %v593
    %911 = vmatmul.bf16.gmra.mxu0 %v874
    %v912 = vpop.f32.mrf.mxu0
    %v913 = vadd.f32 0.0, %v912
    %v914 = vpop.f32.mrf.mxu0
    %v915 = vadd.f32 0.0, %v914
    %916 = vdwg.mxu0
    %917 = vmatpush.bf16.msra.mxu0 %v622
    %918 = vmatpush.bf16.msra.mxu0 %v618
    %919 = vmatpush.bf16.msra.mxu0 %v614
    %920 = vmatpush.bf16.msra.mxu0 %v610
    %921 = vmatpush.bf16.msra.mxu0 %v606
    %922 = vmatpush.bf16.msra.mxu0 %v602
    %923 = vmatpush.bf16.msra.mxu0 %v598
    %924 = vmatpush.bf16.msra.mxu0 %v594
    %925 = vmatmul.bf16.gmra.mxu0 %v874
    %v926 = vpop.f32.mrf.mxu0
    %v927 = vadd.f32 0.0, %v926
    %v928 = vpop.f32.mrf.mxu0
    %v929 = vadd.f32 0.0, %v928
    %930 = vdwg.mxu0
    %v931 = vadd.f32 %v866, %v885
    %v932 = vadd.f32 %v867, %v899
    %v933 = vadd.f32 %v868, %v913
    %v934 = vadd.f32 %v869, %v927
    %v935 = vadd.f32 %v870, %v887
    %v936 = vadd.f32 %v871, %v901
    %v937 = vadd.f32 %v872, %v915
    %v938 = vadd.f32 %v873, %v929
    %v939 = vmul.f32 %v931, 0.5
    %v940 = vmul.f32 %v935, 0.5
    %v941 = vtanh.pop %v939
    %v942 = vtanh.pop %v940
    %v943 = vmul.f32 %v941, 0.5
    %v944 = vmul.f32 %v942, 0.5
    %v945 = vadd.f32 %v943, 0.5
    %v946 = vadd.f32 %v944, 0.5
    %v947 = vmul.f32 %v932, 0.5
    %v948 = vmul.f32 %v936, 0.5
    %v949 = vtanh.pop %v947
    %v950 = vtanh.pop %v948
    %v951 = vmul.f32 %v949, 0.5
    %v952 = vmul.f32 %v950, 0.5
    %v953 = vadd.f32 %v951, 0.5
    %v954 = vadd.f32 %v952, 0.5
    %v955 = vtanh.pop %v933
    %v956 = vtanh.pop %v937
    %v957 = vmul.f32 %v934, 0.5
    %v958 = vmul.f32 %v938, 0.5
    %v959 = vtanh.pop %v957
    %v960 = vtanh.pop %v958
    %v961 = vmul.f32 %v959, 0.5
    %v962 = vmul.f32 %v960, 0.5
    %v963 = vadd.f32 %v961, 0.5
    %v964 = vadd.f32 %v962, 0.5
    %v965 = vmul.f32 %v953, %v859
    %v966 = vmul.f32 %v954, %v860
    %v967 = vmul.f32 %v945, %v955
    %v968 = vmul.f32 %v946, %v956
    %v969 = vadd.f32 %v965, %v967
    %v970 = vadd.f32 %v966, %v968
    %v971 = vtanh.pop %v969
    %v972 = vtanh.pop %v970
    %v973 = vmul.f32 %v963, %v971
    %v974 = vmul.f32 %v964, %v972
    %s975 = scalar_lea.vmem [#allocation2], 192
    %v976 = vld [vmem:[%s975] sm:$0xff]
    %v977 = vld [vmem:[%s975 + $0x8] sm:$0xff]
    %v978 = vld [vmem:[%s975 + $0x10] sm:$0xff]
    %v979 = vld [vmem:[%s975 + $0x18] sm:$0xff]
    %v980 = vld [vmem:[%s975 + $0x20] sm:$0xff]
    %v981 = vld [vmem:[%s975 + $0x28] sm:$0xff]
    %v982 = vld [vmem:[%s975 + $0x30] sm:$0xff]
    %v983 = vld [vmem:[%s975 + $0x38] sm:$0xff]
    %v984 = vpack.c.bf16 %v974, %v973
    %985 = vmatpush.bf16.msra.mxu0 %v619
    %986 = vmatpush.bf16.msra.mxu0 %v615
    %987 = vmatpush.bf16.msra.mxu0 %v611
    %988 = vmatpush.bf16.msra.mxu0 %v607
    %989 = vmatpush.bf16.msra.mxu0 %v603
    %990 = vmatpush.bf16.msra.mxu0 %v599
    %991 = vmatpush.bf16.msra.mxu0 %v595
    %992 = vmatpush.bf16.msra.mxu0 %v591
    %993 = vmatmul.bf16.gmra.mxu0 %v984
    %v994 = vpop.f32.mrf.mxu0
    %v995 = vadd.f32 0.0, %v994
    %v996 = vpop.f32.mrf.mxu0
    %v997 = vadd.f32 0.0, %v996
    %998 = vdwg.mxu0
    %999 = vmatpush.bf16.msra.mxu0 %v620
    %1000 = vmatpush.bf16.msra.mxu0 %v616
    %1001 = vmatpush.bf16.msra.mxu0 %v612
    %1002 = vmatpush.bf16.msra.mxu0 %v608
    %1003 = vmatpush.bf16.msra.mxu0 %v604
    %1004 = vmatpush.bf16.msra.mxu0 %v600
    %1005 = vmatpush.bf16.msra.mxu0 %v596
    %1006 = vmatpush.bf16.msra.mxu0 %v592
    %1007 = vmatmul.bf16.gmra.mxu0 %v984
    %v1008 = vpop.f32.mrf.mxu0
    %v1009 = vadd.f32 0.0, %v1008
    %v1010 = vpop.f32.mrf.mxu0
    %v1011 = vadd.f32 0.0, %v1010
    %1012 = vdwg.mxu0
    %1013 = vmatpush.bf16.msra.mxu0 %v621
    %1014 = vmatpush.bf16.msra.mxu0 %v617
    %1015 = vmatpush.bf16.msra.mxu0 %v613
    %1016 = vmatpush.bf16.msra.mxu0 %v609
    %1017 = vmatpush.bf16.msra.mxu0 %v605
    %1018 = vmatpush.bf16.msra.mxu0 %v601
    %1019 = vmatpush.bf16.msra.mxu0 %v597
    %1020 = vmatpush.bf16.msra.mxu0 %v593
    %1021 = vmatmul.bf16.gmra.mxu0 %v984
    %v1022 = vpop.f32.mrf.mxu0
    %v1023 = vadd.f32 0.0, %v1022
    %v1024 = vpop.f32.mrf.mxu0
    %v1025 = vadd.f32 0.0, %v1024
    %1026 = vdwg.mxu0
    %1027 = vmatpush.bf16.msra.mxu0 %v622
    %1028 = vmatpush.bf16.msra.mxu0 %v618
    %1029 = vmatpush.bf16.msra.mxu0 %v614
    %1030 = vmatpush.bf16.msra.mxu0 %v610
    %1031 = vmatpush.bf16.msra.mxu0 %v606
    %1032 = vmatpush.bf16.msra.mxu0 %v602
    %1033 = vmatpush.bf16.msra.mxu0 %v598
    %1034 = vmatpush.bf16.msra.mxu0 %v594
    %1035 = vmatmul.bf16.gmra.mxu0 %v984
    %v1036 = vpop.f32.mrf.mxu0
    %v1037 = vadd.f32 0.0, %v1036
    %v1038 = vpop.f32.mrf.mxu0
    %v1039 = vadd.f32 0.0, %v1038
    %1040 = vdwg.mxu0
    %v1041 = vadd.f32 %v976, %v995
    %v1042 = vadd.f32 %v977, %v1009
    %v1043 = vadd.f32 %v978, %v1023
    %v1044 = vadd.f32 %v979, %v1037
    %v1045 = vadd.f32 %v980, %v997
    %v1046 = vadd.f32 %v981, %v1011
    %v1047 = vadd.f32 %v982, %v1025
    %v1048 = vadd.f32 %v983, %v1039
    %v1049 = vmul.f32 %v1041, 0.5
    %v1050 = vmul.f32 %v1045, 0.5
    %v1051 = vtanh.pop %v1049
    %v1052 = vtanh.pop %v1050
    %v1053 = vmul.f32 %v1051, 0.5
    %v1054 = vmul.f32 %v1052, 0.5
    %v1055 = vadd.f32 %v1053, 0.5
    %v1056 = vadd.f32 %v1054, 0.5
    %v1057 = vmul.f32 %v1042, 0.5
    %v1058 = vmul.f32 %v1046, 0.5
    %v1059 = vtanh.pop %v1057
    %v1060 = vtanh.pop %v1058
    %v1061 = vmul.f32 %v1059, 0.5
    %v1062 = vmul.f32 %v1060, 0.5
    %v1063 = vadd.f32 %v1061, 0.5
    %v1064 = vadd.f32 %v1062, 0.5
    %v1065 = vtanh.pop %v1043
    %v1066 = vtanh.pop %v1047
    %v1067 = vmul.f32 %v1044, 0.5
    %v1068 = vmul.f32 %v1048, 0.5
    %v1069 = vtanh.pop %v1067
    %v1070 = vtanh.pop %v1068
    %v1071 = vmul.f32 %v1069, 0.5
    %v1072 = vmul.f32 %v1070, 0.5
    %v1073 = vadd.f32 %v1071, 0.5
    %v1074 = vadd.f32 %v1072, 0.5
    %v1075 = vmul.f32 %v1063, %v969
    %v1076 = vmul.f32 %v1064, %v970
    %v1077 = vmul.f32 %v1055, %v1065
    %v1078 = vmul.f32 %v1056, %v1066
    %v1079 = vadd.f32 %v1075, %v1077
    %v1080 = vadd.f32 %v1076, %v1078
    %v1081 = vtanh.pop %v1079
    %v1082 = vtanh.pop %v1080
    %v1083 = vmul.f32 %v1073, %v1081
    %v1084 = vmul.f32 %v1074, %v1082
    %s1085 = scalar_lea.vmem [#allocation2], 256
    %v1086 = vld [vmem:[%s1085] sm:$0xff]
    %v1087 = vld [vmem:[%s1085 + $0x8] sm:$0xff]
    %v1088 = vld [vmem:[%s1085 + $0x10] sm:$0xff]
    %v1089 = vld [vmem:[%s1085 + $0x18] sm:$0xff]
    %v1090 = vld [vmem:[%s1085 + $0x20] sm:$0xff]
    %v1091 = vld [vmem:[%s1085 + $0x28] sm:$0xff]
    %v1092 = vld [vmem:[%s1085 + $0x30] sm:$0xff]
    %v1093 = vld [vmem:[%s1085 + $0x38] sm:$0xff]
    %v1094 = vpack.c.bf16 %v1084, %v1083
    %1095 = vmatpush.bf16.msra.mxu0 %v619
    %1096 = vmatpush.bf16.msra.mxu0 %v615
    %1097 = vmatpush.bf16.msra.mxu0 %v611
    %1098 = vmatpush.bf16.msra.mxu0 %v607
    %1099 = vmatpush.bf16.msra.mxu0 %v603
    %1100 = vmatpush.bf16.msra.mxu0 %v599
    %1101 = vmatpush.bf16.msra.mxu0 %v595
    %1102 = vmatpush.bf16.msra.mxu0 %v591
    %1103 = vmatmul.bf16.gmra.mxu0 %v1094
    %v1104 = vpop.f32.mrf.mxu0
    %v1105 = vadd.f32 0.0, %v1104
    %v1106 = vpop.f32.mrf.mxu0
    %v1107 = vadd.f32 0.0, %v1106
    %1108 = vdwg.mxu0
    %1109 = vmatpush.bf16.msra.mxu0 %v620
    %1110 = vmatpush.bf16.msra.mxu0 %v616
    %1111 = vmatpush.bf16.msra.mxu0 %v612
    %1112 = vmatpush.bf16.msra.mxu0 %v608
    %1113 = vmatpush.bf16.msra.mxu0 %v604
    %1114 = vmatpush.bf16.msra.mxu0 %v600
    %1115 = vmatpush.bf16.msra.mxu0 %v596
    %1116 = vmatpush.bf16.msra.mxu0 %v592
    %1117 = vmatmul.bf16.gmra.mxu0 %v1094
    %v1118 = vpop.f32.mrf.mxu0
    %v1119 = vadd.f32 0.0, %v1118
    %v1120 = vpop.f32.mrf.mxu0
    %v1121 = vadd.f32 0.0, %v1120
    %1122 = vdwg.mxu0
    %1123 = vmatpush.bf16.msra.mxu0 %v621
    %1124 = vmatpush.bf16.msra.mxu0 %v617
    %1125 = vmatpush.bf16.msra.mxu0 %v613
    %1126 = vmatpush.bf16.msra.mxu0 %v609
    %1127 = vmatpush.bf16.msra.mxu0 %v605
    %1128 = vmatpush.bf16.msra.mxu0 %v601
    %1129 = vmatpush.bf16.msra.mxu0 %v597
    %1130 = vmatpush.bf16.msra.mxu0 %v593
    %1131 = vmatmul.bf16.gmra.mxu0 %v1094
    %v1132 = vpop.f32.mrf.mxu0
    %v1133 = vadd.f32 0.0, %v1132
    %v1134 = vpop.f32.mrf.mxu0
    %v1135 = vadd.f32 0.0, %v1134
    %1136 = vdwg.mxu0
    %1137 = vmatpush.bf16.msra.mxu0 %v622
    %1138 = vmatpush.bf16.msra.mxu0 %v618
    %1139 = vmatpush.bf16.msra.mxu0 %v614
    %1140 = vmatpush.bf16.msra.mxu0 %v610
    %1141 = vmatpush.bf16.msra.mxu0 %v606
    %1142 = vmatpush.bf16.msra.mxu0 %v602
    %1143 = vmatpush.bf16.msra.mxu0 %v598
    %1144 = vmatpush.bf16.msra.mxu0 %v594
    %1145 = vmatmul.bf16.gmra.mxu0 %v1094
    %v1146 = vpop.f32.mrf.mxu0
    %v1147 = vadd.f32 0.0, %v1146
    %v1148 = vpop.f32.mrf.mxu0
    %v1149 = vadd.f32 0.0, %v1148
    %1150 = vdwg.mxu0
    %v1151 = vadd.f32 %v1086, %v1105
    %v1152 = vadd.f32 %v1087, %v1119
    %v1153 = vadd.f32 %v1088, %v1133
    %v1154 = vadd.f32 %v1089, %v1147
    %v1155 = vadd.f32 %v1090, %v1107
    %v1156 = vadd.f32 %v1091, %v1121
    %v1157 = vadd.f32 %v1092, %v1135
    %v1158 = vadd.f32 %v1093, %v1149
    %v1159 = vmul.f32 %v1151, 0.5
    %v1160 = vmul.f32 %v1155, 0.5
    %v1161 = vtanh.pop %v1159
    %v1162 = vtanh.pop %v1160
    %v1163 = vmul.f32 %v1161, 0.5
    %v1164 = vmul.f32 %v1162, 0.5
    %v1165 = vadd.f32 %v1163, 0.5
    %v1166 = vadd.f32 %v1164, 0.5
    %v1167 = vmul.f32 %v1152, 0.5
    %v1168 = vmul.f32 %v1156, 0.5
    %v1169 = vtanh.pop %v1167
    %v1170 = vtanh.pop %v1168
    %v1171 = vmul.f32 %v1169, 0.5
    %v1172 = vmul.f32 %v1170, 0.5
    %v1173 = vadd.f32 %v1171, 0.5
    %v1174 = vadd.f32 %v1172, 0.5
    %v1175 = vtanh.pop %v1153
    %v1176 = vtanh.pop %v1157
    %v1177 = vmul.f32 %v1154, 0.5
    %v1178 = vmul.f32 %v1158, 0.5
    %v1179 = vtanh.pop %v1177
    %v1180 = vtanh.pop %v1178
    %v1181 = vmul.f32 %v1179, 0.5
    %v1182 = vmul.f32 %v1180, 0.5
    %v1183 = vadd.f32 %v1181, 0.5
    %v1184 = vadd.f32 %v1182, 0.5
    %v1185 = vmul.f32 %v1173, %v1079
    %v1186 = vmul.f32 %v1174, %v1080
    %v1187 = vmul.f32 %v1165, %v1175
    %v1188 = vmul.f32 %v1166, %v1176
    %v1189 = vadd.f32 %v1185, %v1187
    %v1190 = vadd.f32 %v1186, %v1188
    %v1191 = vtanh.pop %v1189
    %v1192 = vtanh.pop %v1190
    %v1193 = vmul.f32 %v1183, %v1191
    %v1194 = vmul.f32 %v1184, %v1192
    %s1195 = scalar_lea.vmem [#allocation2], 320
    %v1196 = vld [vmem:[%s1195] sm:$0xff]
    %v1197 = vld [vmem:[%s1195 + $0x8] sm:$0xff]
    %v1198 = vld [vmem:[%s1195 + $0x10] sm:$0xff]
    %v1199 = vld [vmem:[%s1195 + $0x18] sm:$0xff]
    %v1200 = vld [vmem:[%s1195 + $0x20] sm:$0xff]
    %v1201 = vld [vmem:[%s1195 + $0x28] sm:$0xff]
    %v1202 = vld [vmem:[%s1195 + $0x30] sm:$0xff]
    %v1203 = vld [vmem:[%s1195 + $0x38] sm:$0xff]
    %v1204 = vpack.c.bf16 %v1194, %v1193
    %1205 = vmatpush.bf16.msra.mxu0 %v619
    %1206 = vmatpush.bf16.msra.mxu0 %v615
    %1207 = vmatpush.bf16.msra.mxu0 %v611
    %1208 = vmatpush.bf16.msra.mxu0 %v607
    %1209 = vmatpush.bf16.msra.mxu0 %v603
    %1210 = vmatpush.bf16.msra.mxu0 %v599
    %1211 = vmatpush.bf16.msra.mxu0 %v595
    %1212 = vmatpush.bf16.msra.mxu0 %v591
    %1213 = vmatmul.bf16.gmra.mxu0 %v1204
    %v1214 = vpop.f32.mrf.mxu0
    %v1215 = vadd.f32 0.0, %v1214
    %v1216 = vpop.f32.mrf.mxu0
    %v1217 = vadd.f32 0.0, %v1216
    %1218 = vdwg.mxu0
    %1219 = vmatpush.bf16.msra.mxu0 %v620
    %1220 = vmatpush.bf16.msra.mxu0 %v616
    %1221 = vmatpush.bf16.msra.mxu0 %v612
    %1222 = vmatpush.bf16.msra.mxu0 %v608
    %1223 = vmatpush.bf16.msra.mxu0 %v604
    %1224 = vmatpush.bf16.msra.mxu0 %v600
    %1225 = vmatpush.bf16.msra.mxu0 %v596
    %1226 = vmatpush.bf16.msra.mxu0 %v592
    %1227 = vmatmul.bf16.gmra.mxu0 %v1204
    %v1228 = vpop.f32.mrf.mxu0
    %v1229 = vadd.f32 0.0, %v1228
    %v1230 = vpop.f32.mrf.mxu0
    %v1231 = vadd.f32 0.0, %v1230
    %1232 = vdwg.mxu0
    %1233 = vmatpush.bf16.msra.mxu0 %v621
    %1234 = vmatpush.bf16.msra.mxu0 %v617
    %1235 = vmatpush.bf16.msra.mxu0 %v613
    %1236 = vmatpush.bf16.msra.mxu0 %v609
    %1237 = vmatpush.bf16.msra.mxu0 %v605
    %1238 = vmatpush.bf16.msra.mxu0 %v601
    %1239 = vmatpush.bf16.msra.mxu0 %v597
    %1240 = vmatpush.bf16.msra.mxu0 %v593
    %1241 = vmatmul.bf16.gmra.mxu0 %v1204
    %v1242 = vpop.f32.mrf.mxu0
    %v1243 = vadd.f32 0.0, %v1242
    %v1244 = vpop.f32.mrf.mxu0
    %v1245 = vadd.f32 0.0, %v1244
    %1246 = vdwg.mxu0
    %1247 = vmatpush.bf16.msra.mxu0 %v622
    %1248 = vmatpush.bf16.msra.mxu0 %v618
    %1249 = vmatpush.bf16.msra.mxu0 %v614
    %1250 = vmatpush.bf16.msra.mxu0 %v610
    %1251 = vmatpush.bf16.msra.mxu0 %v606
    %1252 = vmatpush.bf16.msra.mxu0 %v602
    %1253 = vmatpush.bf16.msra.mxu0 %v598
    %1254 = vmatpush.bf16.msra.mxu0 %v594
    %1255 = vmatmul.bf16.gmra.mxu0 %v1204
    %v1256 = vpop.f32.mrf.mxu0
    %v1257 = vadd.f32 0.0, %v1256
    %v1258 = vpop.f32.mrf.mxu0
    %v1259 = vadd.f32 0.0, %v1258
    %1260 = vdwg.mxu0
    %v1261 = vadd.f32 %v1196, %v1215
    %v1262 = vadd.f32 %v1197, %v1229
    %v1263 = vadd.f32 %v1198, %v1243
    %v1264 = vadd.f32 %v1199, %v1257
    %v1265 = vadd.f32 %v1200, %v1217
    %v1266 = vadd.f32 %v1201, %v1231
    %v1267 = vadd.f32 %v1202, %v1245
    %v1268 = vadd.f32 %v1203, %v1259
    %v1269 = vmul.f32 %v1261, 0.5
    %v1270 = vmul.f32 %v1265, 0.5
    %v1271 = vtanh.pop %v1269
    %v1272 = vtanh.pop %v1270
    %v1273 = vmul.f32 %v1271, 0.5
    %v1274 = vmul.f32 %v1272, 0.5
    %v1275 = vadd.f32 %v1273, 0.5
    %v1276 = vadd.f32 %v1274, 0.5
    %v1277 = vmul.f32 %v1262, 0.5
    %v1278 = vmul.f32 %v1266, 0.5
    %v1279 = vtanh.pop %v1277
    %v1280 = vtanh.pop %v1278
    %v1281 = vmul.f32 %v1279, 0.5
    %v1282 = vmul.f32 %v1280, 0.5
    %v1283 = vadd.f32 %v1281, 0.5
    %v1284 = vadd.f32 %v1282, 0.5
    %v1285 = vtanh.pop %v1263
    %v1286 = vtanh.pop %v1267
    %v1287 = vmul.f32 %v1264, 0.5
    %v1288 = vmul.f32 %v1268, 0.5
    %v1289 = vtanh.pop %v1287
    %v1290 = vtanh.pop %v1288
    %v1291 = vmul.f32 %v1289, 0.5
    %v1292 = vmul.f32 %v1290, 0.5
    %v1293 = vadd.f32 %v1291, 0.5
    %v1294 = vadd.f32 %v1292, 0.5
    %v1295 = vmul.f32 %v1283, %v1189
    %v1296 = vmul.f32 %v1284, %v1190
    %v1297 = vmul.f32 %v1275, %v1285
    %v1298 = vmul.f32 %v1276, %v1286
    %v1299 = vadd.f32 %v1295, %v1297
    %v1300 = vadd.f32 %v1296, %v1298
    %v1301 = vtanh.pop %v1299
    %v1302 = vtanh.pop %v1300
    %v1303 = vmul.f32 %v1293, %v1301
    %v1304 = vmul.f32 %v1294, %v1302
    %s1305 = scalar_lea.vmem [#allocation2], 384
    %v1306 = vld [vmem:[%s1305] sm:$0xff]
    %v1307 = vld [vmem:[%s1305 + $0x8] sm:$0xff]
    %v1308 = vld [vmem:[%s1305 + $0x10] sm:$0xff]
    %v1309 = vld [vmem:[%s1305 + $0x18] sm:$0xff]
    %v1310 = vld [vmem:[%s1305 + $0x20] sm:$0xff]
    %v1311 = vld [vmem:[%s1305 + $0x28] sm:$0xff]
    %v1312 = vld [vmem:[%s1305 + $0x30] sm:$0xff]
    %v1313 = vld [vmem:[%s1305 + $0x38] sm:$0xff]
    %v1314 = vpack.c.bf16 %v1304, %v1303
    %1315 = vmatpush.bf16.msra.mxu0 %v619
    %1316 = vmatpush.bf16.msra.mxu0 %v615
    %1317 = vmatpush.bf16.msra.mxu0 %v611
    %1318 = vmatpush.bf16.msra.mxu0 %v607
    %1319 = vmatpush.bf16.msra.mxu0 %v603
    %1320 = vmatpush.bf16.msra.mxu0 %v599
    %1321 = vmatpush.bf16.msra.mxu0 %v595
    %1322 = vmatpush.bf16.msra.mxu0 %v591
    %1323 = vmatmul.bf16.gmra.mxu0 %v1314
    %v1324 = vpop.f32.mrf.mxu0
    %v1325 = vadd.f32 0.0, %v1324
    %v1326 = vpop.f32.mrf.mxu0
    %v1327 = vadd.f32 0.0, %v1326
    %1328 = vdwg.mxu0
    %1329 = vmatpush.bf16.msra.mxu0 %v620
    %1330 = vmatpush.bf16.msra.mxu0 %v616
    %1331 = vmatpush.bf16.msra.mxu0 %v612
    %1332 = vmatpush.bf16.msra.mxu0 %v608
    %1333 = vmatpush.bf16.msra.mxu0 %v604
    %1334 = vmatpush.bf16.msra.mxu0 %v600
    %1335 = vmatpush.bf16.msra.mxu0 %v596
    %1336 = vmatpush.bf16.msra.mxu0 %v592
    %1337 = vmatmul.bf16.gmra.mxu0 %v1314
    %v1338 = vpop.f32.mrf.mxu0
    %v1339 = vadd.f32 0.0, %v1338
    %v1340 = vpop.f32.mrf.mxu0
    %v1341 = vadd.f32 0.0, %v1340
    %1342 = vdwg.mxu0
    %1343 = vmatpush.bf16.msra.mxu0 %v621
    %1344 = vmatpush.bf16.msra.mxu0 %v617
    %1345 = vmatpush.bf16.msra.mxu0 %v613
    %1346 = vmatpush.bf16.msra.mxu0 %v609
    %1347 = vmatpush.bf16.msra.mxu0 %v605
    %1348 = vmatpush.bf16.msra.mxu0 %v601
    %1349 = vmatpush.bf16.msra.mxu0 %v597
    %1350 = vmatpush.bf16.msra.mxu0 %v593
    %1351 = vmatmul.bf16.gmra.mxu0 %v1314
    %v1352 = vpop.f32.mrf.mxu0
    %v1353 = vadd.f32 0.0, %v1352
    %v1354 = vpop.f32.mrf.mxu0
    %v1355 = vadd.f32 0.0, %v1354
    %1356 = vdwg.mxu0
    %1357 = vmatpush.bf16.msra.mxu0 %v622
    %1358 = vmatpush.bf16.msra.mxu0 %v618
    %1359 = vmatpush.bf16.msra.mxu0 %v614
    %1360 = vmatpush.bf16.msra.mxu0 %v610
    %1361 = vmatpush.bf16.msra.mxu0 %v606
    %1362 = vmatpush.bf16.msra.mxu0 %v602
    %1363 = vmatpush.bf16.msra.mxu0 %v598
    %1364 = vmatpush.bf16.msra.mxu0 %v594
    %1365 = vmatmul.bf16.gmra.mxu0 %v1314
    %v1366 = vpop.f32.mrf.mxu0
    %v1367 = vadd.f32 0.0, %v1366
    %v1368 = vpop.f32.mrf.mxu0
    %v1369 = vadd.f32 0.0, %v1368
    %1370 = vdwg.mxu0
    %v1371 = vadd.f32 %v1306, %v1325
    %v1372 = vadd.f32 %v1307, %v1339
    %v1373 = vadd.f32 %v1308, %v1353
    %v1374 = vadd.f32 %v1309, %v1367
    %v1375 = vadd.f32 %v1310, %v1327
    %v1376 = vadd.f32 %v1311, %v1341
    %v1377 = vadd.f32 %v1312, %v1355
    %v1378 = vadd.f32 %v1313, %v1369
    %v1379 = vmul.f32 %v1371, 0.5
    %v1380 = vmul.f32 %v1375, 0.5
    %v1381 = vtanh.pop %v1379
    %v1382 = vtanh.pop %v1380
    %v1383 = vmul.f32 %v1381, 0.5
    %v1384 = vmul.f32 %v1382, 0.5
    %v1385 = vadd.f32 %v1383, 0.5
    %v1386 = vadd.f32 %v1384, 0.5
    %v1387 = vmul.f32 %v1372, 0.5
    %v1388 = vmul.f32 %v1376, 0.5
    %v1389 = vtanh.pop %v1387
    %v1390 = vtanh.pop %v1388
    %v1391 = vmul.f32 %v1389, 0.5
    %v1392 = vmul.f32 %v1390, 0.5
    %v1393 = vadd.f32 %v1391, 0.5
    %v1394 = vadd.f32 %v1392, 0.5
    %v1395 = vtanh.pop %v1373
    %v1396 = vtanh.pop %v1377
    %v1397 = vmul.f32 %v1374, 0.5
    %v1398 = vmul.f32 %v1378, 0.5
    %v1399 = vtanh.pop %v1397
    %v1400 = vtanh.pop %v1398
    %v1401 = vmul.f32 %v1399, 0.5
    %v1402 = vmul.f32 %v1400, 0.5
    %v1403 = vadd.f32 %v1401, 0.5
    %v1404 = vadd.f32 %v1402, 0.5
    %v1405 = vmul.f32 %v1393, %v1299
    %v1406 = vmul.f32 %v1394, %v1300
    %v1407 = vmul.f32 %v1385, %v1395
    %v1408 = vmul.f32 %v1386, %v1396
    %v1409 = vadd.f32 %v1405, %v1407
    %v1410 = vadd.f32 %v1406, %v1408
    %v1411 = vtanh.pop %v1409
    %v1412 = vtanh.pop %v1410
    %v1413 = vmul.f32 %v1403, %v1411
    %v1414 = vmul.f32 %v1404, %v1412
    %s1415 = scalar_lea.vmem [#allocation2], 448
    %v1416 = vld [vmem:[%s1415] sm:$0xff]
    %v1417 = vld [vmem:[%s1415 + $0x8] sm:$0xff]
    %v1418 = vld [vmem:[%s1415 + $0x10] sm:$0xff]
    %v1419 = vld [vmem:[%s1415 + $0x18] sm:$0xff]
    %v1420 = vld [vmem:[%s1415 + $0x20] sm:$0xff]
    %v1421 = vld [vmem:[%s1415 + $0x28] sm:$0xff]
    %v1422 = vld [vmem:[%s1415 + $0x30] sm:$0xff]
    %v1423 = vld [vmem:[%s1415 + $0x38] sm:$0xff]
    %v1424 = vpack.c.bf16 %v1414, %v1413
    %1425 = vmatpush.bf16.msra.mxu0 %v619
    %1426 = vmatpush.bf16.msra.mxu0 %v615
    %1427 = vmatpush.bf16.msra.mxu0 %v611
    %1428 = vmatpush.bf16.msra.mxu0 %v607
    %1429 = vmatpush.bf16.msra.mxu0 %v603
    %1430 = vmatpush.bf16.msra.mxu0 %v599
    %1431 = vmatpush.bf16.msra.mxu0 %v595
    %1432 = vmatpush.bf16.msra.mxu0 %v591
    %1433 = vmatmul.bf16.gmra.mxu0 %v1424
    %v1434 = vpop.f32.mrf.mxu0
    %v1435 = vadd.f32 0.0, %v1434
    %v1436 = vpop.f32.mrf.mxu0
    %v1437 = vadd.f32 0.0, %v1436
    %1438 = vdwg.mxu0
    %1439 = vmatpush.bf16.msra.mxu0 %v620
    %1440 = vmatpush.bf16.msra.mxu0 %v616
    %1441 = vmatpush.bf16.msra.mxu0 %v612
    %1442 = vmatpush.bf16.msra.mxu0 %v608
    %1443 = vmatpush.bf16.msra.mxu0 %v604
    %1444 = vmatpush.bf16.msra.mxu0 %v600
    %1445 = vmatpush.bf16.msra.mxu0 %v596
    %1446 = vmatpush.bf16.msra.mxu0 %v592
    %1447 = vmatmul.bf16.gmra.mxu0 %v1424
    %v1448 = vpop.f32.mrf.mxu0
    %v1449 = vadd.f32 0.0, %v1448
    %v1450 = vpop.f32.mrf.mxu0
    %v1451 = vadd.f32 0.0, %v1450
    %1452 = vdwg.mxu0
    %1453 = vmatpush.bf16.msra.mxu0 %v621
    %1454 = vmatpush.bf16.msra.mxu0 %v617
    %1455 = vmatpush.bf16.msra.mxu0 %v613
    %1456 = vmatpush.bf16.msra.mxu0 %v609
    %1457 = vmatpush.bf16.msra.mxu0 %v605
    %1458 = vmatpush.bf16.msra.mxu0 %v601
    %1459 = vmatpush.bf16.msra.mxu0 %v597
    %1460 = vmatpush.bf16.msra.mxu0 %v593
    %1461 = vmatmul.bf16.gmra.mxu0 %v1424
    %v1462 = vpop.f32.mrf.mxu0
    %v1463 = vadd.f32 0.0, %v1462
    %v1464 = vpop.f32.mrf.mxu0
    %v1465 = vadd.f32 0.0, %v1464
    %1466 = vdwg.mxu0
    %1467 = vmatpush.bf16.msra.mxu0 %v622
    %1468 = vmatpush.bf16.msra.mxu0 %v618
    %1469 = vmatpush.bf16.msra.mxu0 %v614
    %1470 = vmatpush.bf16.msra.mxu0 %v610
    %1471 = vmatpush.bf16.msra.mxu0 %v606
    %1472 = vmatpush.bf16.msra.mxu0 %v602
    %1473 = vmatpush.bf16.msra.mxu0 %v598
    %1474 = vmatpush.bf16.msra.mxu0 %v594
    %1475 = vmatmul.bf16.gmra.mxu0 %v1424
    %v1476 = vpop.f32.mrf.mxu0
    %v1477 = vadd.f32 0.0, %v1476
    %v1478 = vpop.f32.mrf.mxu0
    %v1479 = vadd.f32 0.0, %v1478
    %1480 = vdwg.mxu0
    %v1481 = vadd.f32 %v1416, %v1435
    %v1482 = vadd.f32 %v1417, %v1449
    %v1483 = vadd.f32 %v1418, %v1463
    %v1484 = vadd.f32 %v1419, %v1477
    %v1485 = vadd.f32 %v1420, %v1437
    %v1486 = vadd.f32 %v1421, %v1451
    %v1487 = vadd.f32 %v1422, %v1465
    %v1488 = vadd.f32 %v1423, %v1479
    %v1489 = vmul.f32 %v1481, 0.5
    %v1490 = vmul.f32 %v1485, 0.5
    %v1491 = vtanh.pop %v1489
    %v1492 = vtanh.pop %v1490
    %v1493 = vmul.f32 %v1491, 0.5
    %v1494 = vmul.f32 %v1492, 0.5
    %v1495 = vadd.f32 %v1493, 0.5
    %v1496 = vadd.f32 %v1494, 0.5
    %v1497 = vmul.f32 %v1482, 0.5
    %v1498 = vmul.f32 %v1486, 0.5
    %v1499 = vtanh.pop %v1497
    %v1500 = vtanh.pop %v1498
    %v1501 = vmul.f32 %v1499, 0.5
    %v1502 = vmul.f32 %v1500, 0.5
    %v1503 = vadd.f32 %v1501, 0.5
    %v1504 = vadd.f32 %v1502, 0.5
    %v1505 = vtanh.pop %v1483
    %v1506 = vtanh.pop %v1487
    %v1507 = vmul.f32 %v1484, 0.5
    %v1508 = vmul.f32 %v1488, 0.5
    %v1509 = vtanh.pop %v1507
    %v1510 = vtanh.pop %v1508
    %v1511 = vmul.f32 %v1509, 0.5
    %v1512 = vmul.f32 %v1510, 0.5
    %v1513 = vadd.f32 %v1511, 0.5
    %v1514 = vadd.f32 %v1512, 0.5
    %v1515 = vmul.f32 %v1503, %v1409
    %v1516 = vmul.f32 %v1504, %v1410
    %v1517 = vmul.f32 %v1495, %v1505
    %v1518 = vmul.f32 %v1496, %v1506
    %v1519 = vadd.f32 %v1515, %v1517
    %v1520 = vadd.f32 %v1516, %v1518
    %v1521 = vtanh.pop %v1519
    %v1522 = vtanh.pop %v1520
    %v1523 = vmul.f32 %v1513, %v1521
    %v1524 = vmul.f32 %v1514, %v1522
    %1525 = vst [vmem:[#allocation11] sm:$0xff] %v1523
    %1526 = vst [vmem:[#allocation11 + $0x8] sm:$0xff] %v1524
    // Predicated region
    $region34: #{tpu_custom_call.1} parent=1 // pred_check
      _
    $region35: #{tpu_custom_call.1} parent=1 // pred_check_branch
      %1528 = sbr.rel (0) target = $region37
    $region36: #{tpu_custom_call.1} parent=1 // pred_region
      %1530 = vsyncadd [#allocation5], 0
      %s1531 = sshll.u32 [#allocation11], 4
      %s1532 = int_to_ptr.vmem [resolvable:$true] %s1531
      %s1533 = sshll.u32 %s4, 4
      %s1534 = int_to_ptr.hbm [resolvable:$true] %s1533
      %1539 = dma.vmem_to_hbm [thread:$0]  %s1532, 256, %s1534, [#allocation5], 128, 128, 8
    $region37: #{tpu_custom_call.1} parent=1 // pred_fallthru
      _
    // Predicated region
    $region38: #{tpu_custom_call.1} parent=1 // pred_check
      _
    $region39: #{tpu_custom_call.1} parent=1 // pred_check_branch
      %1541 = sbr.rel (0) target = $region41
    $region40: #{tpu_custom_call.1} parent=1 // pred_region
      %1543 = dma.done [#allocation5], 256
    $region41: #{tpu_custom_call.1} parent=1 // pred_fallthru
      _
    %1544 = vsyncpa [#allocation4], 1
    %1545 = vsyncpa [#allocation7], 1
    %1546 = vsyncpa [#allocation10], 1
    %1547 = vsyncpa [#allocation5], 1

</llo_original>
